<compile_context>
chip_gen: v5e
topology: v5e:2x2
jax: 0.10.0
libtpu: 0.0.40
codegen_flags: <defaults>
</compile_context>

<pallas_src>
import jax
import jax.numpy as jnp
from jax.experimental import pallas as pl
from jax.experimental.pallas import tpu as pltpu

NUM_IN, NUM_HID, NUM_OUT = 28 * 28, 500, 10   # torch module dims (K=784, unpadded)
HP, OP = 512, 128                              # lane-aligned hidden / output dims
NEG_BIG = -1e30                                # masks the 118 padded output lanes


def _round_up(n, m):
    return ((n + m - 1) // m) * m


def _choose_tb(B):
    """Pick the batch tile.

    Small B: a single tile, rounded up to >=16 rows (bf16 packs 16 sublanes
    per vreg).  Large B: multiples of 256, as large as 1024 to amortize the
    ~0.35us per-grid-step overhead, but always >=2 grid steps so both v7x
    TensorCores get work under dimension_semantics=("parallel",).
    """
    if B < 512:
        return _round_up(max(B, 16), 16)
    half = (B // 2) // 256 * 256
    return max(256, min(1024, half))


def netfull_kernel(x_ref, w1_ref, b1_ref, w2_ref, b2_ref, o_ref):
    # x_ref:  (TB, 784) f32     w1_ref: (784, HP) bf16    b1_ref: (1, HP) f32
    # w2_ref: (HP, OP)  bf16    b2_ref: (1, OP)   f32     o_ref:  (TB, OP) f32
    x = x_ref[...].astype(jnp.bfloat16)        # in-kernel cast (VPU-cheap)

    # fc1: bf16 MXU matmul with f32 accumulation, then tanh in bf16 (h gets
    # truncated to bf16 for fc2 anyway; bf16 EUP is ~2x on v6e/v7x, and on
    # v5e the compiler just upconverts — no harm).
    h32 = jnp.dot(x, w1_ref[...], preferred_element_type=jnp.float32) + b1_ref[...]
    h = jnp.tanh(h32.astype(jnp.bfloat16))

    # fc2 (tiny) on the MXU, f32 accumulation.
    logits = (
        jnp.dot(h, w2_ref[...], preferred_element_type=jnp.float32) + b2_ref[...]
    )

    # Numerically stable log_softmax over the last dim.  Padded lanes carry a
    # -1e30 bias, so they never win the max and exp() underflows to exactly 0.
    m = jnp.max(logits, axis=-1, keepdims=True)
    s = logits - m
    lse = jnp.log(jnp.sum(jnp.exp(s), axis=-1, keepdims=True))
    o_ref[...] = s - lse


def prepare_params(w1, b1, w2, b2):
    """One-time: transpose to (in,out), pad H->512 / O->128, cast weights to bf16."""
    w1_t = jnp.zeros((NUM_IN, HP), jnp.float32).at[:, :NUM_HID].set(w1.T)
    b1_p = jnp.zeros((1, HP), jnp.float32).at[:, :NUM_HID].set(b1[None, :])
    w2_t = jnp.zeros((HP, OP), jnp.float32).at[:NUM_HID, :NUM_OUT].set(w2.T)
    b2_p = jnp.full((1, OP), NEG_BIG, jnp.float32).at[:, :NUM_OUT].set(b2[None, :])
    return (w1_t.astype(jnp.bfloat16), b1_p, w2_t.astype(jnp.bfloat16), b2_p)


@jax.jit
def netfull_forward(x, w1_t, b1_p, w2_t, b2_p):
    """x: (B, ...) with prod(non-batch dims) == 784. Returns (B, 10) f32 log-probs."""
    B = x.shape[0]
    x2d = x.reshape(B, -1)                     # x.view(-1, num_flat_features(x))
    assert x2d.shape[1] == NUM_IN, "input must flatten to 784 features"

    TB = _choose_tb(B)
    n_tiles = pl.cdiv(B, TB)                   # ragged last tile handled by clipped DMA
    rows = n_tiles * TB                        # rows of MXU work actually issued

    # Per-step VMEM (TB=1024): x 2x3.1 MiB + out 2x0.5 MiB + w1 2x0.77 MiB
    # + w2/biases  ~= 9 MiB, well under the 32 MiB scoped default everywhere.
    out = pl.pallas_call(
        netfull_kernel,
        out_shape=jax.ShapeDtypeStruct((B, OP), jnp.float32),
        grid=(n_tiles,),
        in_specs=[
            # x streamed straight from HBM as f32 (no wrapper pad/cast);
            # 784 equals the full last dim so the (8,128) rule is satisfied.
            pl.BlockSpec((TB, NUM_IN), lambda i: (i, 0)),
            pl.BlockSpec((NUM_IN, HP), lambda i: (0, 0)),   # w1 (VMEM-resident)
            pl.BlockSpec((1, HP), lambda i: (0, 0)),        # b1 (resident)
            pl.BlockSpec((HP, OP), lambda i: (0, 0)),       # w2 (resident)
            pl.BlockSpec((1, OP), lambda i: (0, 0)),        # b2 (resident)
        ],
        out_specs=pl.BlockSpec((TB, OP), lambda i: (i, 0)),
        compiler_params=pltpu.CompilerParams(
            dimension_semantics=("parallel",),              # shard tiles across TCs
        ),
        cost_estimate=pl.CostEstimate(
            flops=2 * rows * (NUM_IN * HP + HP * OP),
            transcendentals=rows * (HP + OP),               # tanh + exp
            bytes_accessed=(B * NUM_IN * 4 + NUM_IN * HP * 2 + HP * 4
                            + HP * OP * 2 + OP * 4 + B * OP * 4),
        ),
    )(x2d, w1_t, b1_p, w2_t, b2_p)

    # Batch is exact (no pad); just drop the 118 padded output lanes.
    return out[:, :NUM_OUT]


def init_params(key):
    """Deterministic init mimicking nn.Linear's U(-1/sqrt(fan_in), 1/sqrt(fan_in))."""
    k1, k2, k3, k4 = jax.random.split(key, 4)
    bound1 = 1.0 / jnp.sqrt(784.0)
    bound2 = 1.0 / jnp.sqrt(500.0)
    w1 = jax.random.uniform(k1, (500, 784), jnp.float32, -bound1, bound1)
    b1 = jax.random.uniform(k2, (500,), jnp.float32, -bound1, bound1)
    w2 = jax.random.uniform(k3, (10, 500), jnp.float32, -bound2, bound2)
    b2 = jax.random.uniform(k4, (10,), jnp.float32, -bound2, bound2)
    return w1, b1, w2, b2


def reference_forward_f32(x, w1, b1, w2, b2):
    """Pure-f32 JAX reference matching the PyTorch forward."""
    B = x.shape[0]
    x2d = x.reshape(B, -1)
    h = jnp.tanh(jnp.dot(x2d, w1.T, precision=jax.lax.Precision.HIGHEST) + b1)
    logits = jnp.dot(h, w2.T, precision=jax.lax.Precision.HIGHEST) + b2
    return jax.nn.log_softmax(logits, axis=-1)


def reference_forward_bf16(x, w1, b1, w2, b2):
    """Reference simulating the kernel's bf16-input / f32-accumulate arithmetic."""
    f32 = jnp.float32
    B = x.shape[0]
    xb = x.reshape(B, -1).astype(jnp.bfloat16).astype(f32)
    w1b = w1.astype(jnp.bfloat16).astype(f32)
    h_pre = jnp.dot(xb, w1b.T, precision=jax.lax.Precision.HIGHEST) + b1
    hb = jnp.tanh(h_pre.astype(jnp.bfloat16)).astype(f32)   # bf16 tanh like kernel
    w2b = w2.astype(jnp.bfloat16).astype(f32)
    logits = jnp.dot(hb, w2b.T, precision=jax.lax.Precision.HIGHEST) + b2
    return jax.nn.log_softmax(logits, axis=-1)


if __name__ == "__main__":
    key = jax.random.PRNGKey(0)
    kx, kp = jax.random.split(key)

    # MNIST-style input: batch=2, NCHW (2, 1, 28, 28)
    x = jax.random.normal(kx, (2, 1, 28, 28), jnp.float32)
    w1, b1, w2, b2 = init_params(kp)
    params = prepare_params(w1, b1, w2, b2)   # one-time transpose/pad/cast

    out = netfull_forward(x, *params)
    out = jax.block_until_ready(out)
    assert out.shape == (2, NUM_OUT)
    assert bool(jnp.all(jnp.isfinite(out)))

    ref_tight = reference_forward_bf16(x, w1, b1, w2, b2)   # same arithmetic
    ref_f32 = reference_forward_f32(x, w1, b1, w2, b2)      # module semantics
    assert jnp.allclose(out, ref_tight, atol=5e-3, rtol=5e-3), "mismatch vs bf16-sim reference"
    assert jnp.allclose(out, ref_f32, atol=5e-2, rtol=5e-2), "mismatch vs f32 reference"

    print("KERNEL_OK")
</pallas_src>

<mosaic_0001>
module attributes {stable_mosaic.version = 11 : i64} {
  func.func @netfull_kernel(%arg0: i32, %arg1: memref<16x784xf32, #tpu.memory_space<vmem>>, %arg2: memref<784x512xbf16, #tpu.memory_space<vmem>>, %arg3: memref<1x512xf32, #tpu.memory_space<vmem>>, %arg4: memref<512x128xbf16, #tpu.memory_space<vmem>>, %arg5: memref<1x128xf32, #tpu.memory_space<vmem>>, %arg6: memref<16x128xf32, #tpu.memory_space<vmem>>) attributes {dimension_semantics = [#tpu.dimension_semantics<parallel>], iteration_bounds = array<i64: 1>, scalar_prefetch = 0 : i64, scratch_operands = 0 : i64, tpu.core_type = #tpu.core_type<tc>, window_params = [{transform_indices = @transform_0, window_bounds = array<i64: 16, 784>}, {pipeline_mode = #tpu.pipeline_mode<synchronous>, transform_indices = @transform_1, window_bounds = array<i64: 784, 512>}, {pipeline_mode = #tpu.pipeline_mode<synchronous>, transform_indices = @transform_2, window_bounds = array<i64: 1, 512>}, {pipeline_mode = #tpu.pipeline_mode<synchronous>, transform_indices = @transform_3, window_bounds = array<i64: 512, 128>}, {pipeline_mode = #tpu.pipeline_mode<synchronous>, transform_indices = @transform_4, window_bounds = array<i64: 1, 128>}, {transform_indices = @transform_5, window_bounds = array<i64: 16, 128>}]} {
    %c0 = arith.constant 0 : index
    %c0_0 = arith.constant 0 : index
    %0 = vector.load %arg1[%c0, %c0_0] : memref<16x784xf32, #tpu.memory_space<vmem>>, vector<16x784xf32>
    %1 = arith.truncf %0 : vector<16x784xf32> to vector<16x784xbf16>
    %c0_1 = arith.constant 0 : index
    %c0_2 = arith.constant 0 : index
    %2 = vector.load %arg2[%c0_1, %c0_2] : memref<784x512xbf16, #tpu.memory_space<vmem>>, vector<784x512xbf16>
    %cst = arith.constant dense<0.000000e+00> : vector<16x512xf32>
    %3 = tpu.matmul %1, %2, %cst {dimension_numbers = #tpu.dot_dimension_numbers<[1], [0], [0], [1], [0, 0, 1, 1], [], []>} : vector<16x784xbf16>, vector<784x512xbf16>, vector<16x512xf32> -> vector<16x512xf32>
    %c0_3 = arith.constant 0 : index
    %c0_4 = arith.constant 0 : index
    %4 = vector.load %arg3[%c0_3, %c0_4] : memref<1x512xf32, #tpu.memory_space<vmem>>, vector<1x512xf32>
    %5 = vector.broadcast %4 : vector<1x512xf32> to vector<16x512xf32>
    %6 = arith.addf %3, %5 : vector<16x512xf32>
    %7 = arith.truncf %6 : vector<16x512xf32> to vector<16x512xbf16>
    %8 = math.tanh %7 : vector<16x512xbf16>
    %c0_5 = arith.constant 0 : index
    %c0_6 = arith.constant 0 : index
    %9 = vector.load %arg4[%c0_5, %c0_6] : memref<512x128xbf16, #tpu.memory_space<vmem>>, vector<512x128xbf16>
    %cst_7 = arith.constant dense<0.000000e+00> : vector<16x128xf32>
    %10 = tpu.matmul %8, %9, %cst_7 {dimension_numbers = #tpu.dot_dimension_numbers<[1], [0], [0], [1], [0, 0, 1, 1], [], []>} : vector<16x512xbf16>, vector<512x128xbf16>, vector<16x128xf32> -> vector<16x128xf32>
    %c0_8 = arith.constant 0 : index
    %c0_9 = arith.constant 0 : index
    %11 = vector.load %arg5[%c0_8, %c0_9] : memref<1x128xf32, #tpu.memory_space<vmem>>, vector<1x128xf32>
    %12 = vector.broadcast %11 : vector<1x128xf32> to vector<16x128xf32>
    %13 = arith.addf %10, %12 : vector<16x128xf32>
    %cst_10 = arith.constant dense<0xFF800000> : vector<16xf32>
    %14 = vector.multi_reduction <maximumf>, %13, %cst_10 [1] : vector<16x128xf32> to vector<16xf32>
    %15 = vector.shape_cast %14 : vector<16xf32> to vector<16x1xf32>
    %16 = vector.broadcast %15 : vector<16x1xf32> to vector<16x128xf32>
    %17 = arith.subf %13, %16 : vector<16x128xf32>
    %18 = math.exp %17 : vector<16x128xf32>
    %cst_11 = arith.constant dense<0.000000e+00> : vector<16xf32>
    %19 = vector.multi_reduction <add>, %18, %cst_11 [1] : vector<16x128xf32> to vector<16xf32>
    %20 = vector.shape_cast %19 : vector<16xf32> to vector<16x1xf32>
    %21 = math.log %20 : vector<16x1xf32>
    %22 = vector.broadcast %21 : vector<16x1xf32> to vector<16x128xf32>
    %23 = arith.subf %17, %22 : vector<16x128xf32>
    %c0_12 = arith.constant 0 : index
    %c0_13 = arith.constant 0 : index
    %24 = vector.load %arg6[%c0_12, %c0_13] : memref<16x128xf32, #tpu.memory_space<vmem>>, vector<16x128xf32>
    tpu.vector_store %arg6[%c0_12, %c0_13], %23 {strides = array<i32>} : memref<16x128xf32, #tpu.memory_space<vmem>>, vector<16x128xf32>,
    return
  }
  func.func @transform_0(%arg0: i32) -> (i32, i32) {
    %c0_i32 = arith.constant 0 : i32
    %c0_i32_0 = arith.constant 0 : i32
    return %arg0, %c0_i32 : i32, i32
  }
  func.func @transform_1(%arg0: i32) -> (i32, i32) {
    %c0_i32 = arith.constant 0 : i32
    %c0_i32_0 = arith.constant 0 : i32
    %c0_i32_1 = arith.constant 0 : i32
    return %c0_i32, %c0_i32_0 : i32, i32
  }
  func.func @transform_2(%arg0: i32) -> (i32, i32) {
    %c0_i32 = arith.constant 0 : i32
    %c0_i32_0 = arith.constant 0 : i32
    %c0_i32_1 = arith.constant 0 : i32
    return %c0_i32, %c0_i32_0 : i32, i32
  }
  func.func @transform_3(%arg0: i32) -> (i32, i32) {
    %c0_i32 = arith.constant 0 : i32
    %c0_i32_0 = arith.constant 0 : i32
    %c0_i32_1 = arith.constant 0 : i32
    return %c0_i32, %c0_i32_0 : i32, i32
  }
  func.func @transform_4(%arg0: i32) -> (i32, i32) {
    %c0_i32 = arith.constant 0 : i32
    %c0_i32_0 = arith.constant 0 : i32
    %c0_i32_1 = arith.constant 0 : i32
    return %c0_i32, %c0_i32_0 : i32, i32
  }
  func.func @transform_5(%arg0: i32) -> (i32, i32) {
    %c0_i32 = arith.constant 0 : i32
    %c0_i32_0 = arith.constant 0 : i32
    return %arg0, %c0_i32 : i32, i32
  }
}

</mosaic_0001>

<llo_original>
// kernel: netfull_forward.1
$region0: #{netfull_forward.1}
  #allocation0 [shape = 'u32[]', space=smem, size = 0x4, offset = 0x4, fixed_abs, tag = 'smem constant byte address 0x4 - core index']
  #allocation1 [shape = 'u32[72,128]{1,0:T(1,128)}', space=vmem, size = 0x9000, scoped, tag = 'internal scratch']
  %s0 = inlined_call_operand.vmem [shape: f32[2,784], index: 0, kind: input, shape index: {}]
  %s1 = inlined_call_operand.hbm [shape: bf16[784,512], index: 1, kind: input, shape index: {}]
  %s2 = inlined_call_operand.vmem [shape: f32[1,512], index: 2, kind: input, shape index: {}]
  %s3 = inlined_call_operand.hbm [shape: bf16[512,128], index: 3, kind: input, shape index: {}]
  %s4 = inlined_call_operand.vmem [shape: f32[1,128], index: 4, kind: input, shape index: {}]
  %s5 = inlined_call_operand.hbm [shape: f32[2,128], index: 5, kind: output, shape index: {}]
  %s6 = sld [smem:[#allocation0]]
  $region38: #{netfull_forward.1} parent=0
    _
  %s8 = ssub.s32 1, %s6
  %s9 = scalar_select 0, %s8, %s6
  $region1: #{netfull_forward.1} parent=0
    #allocation2 [shape = 'u8[802816]{0}', space=vmem, size = 0xc4000, scoped, tag = 'input window, operand 1, single buffered']
    #allocation3 [shape = 's32[1]{0}', space=sflag, size = 0x4, scoped, tag = 'scoped memory for netfull_forward.1']
    #allocation4 [shape = 's32[1]{0}', space=sflag, size = 0x4, scoped, tag = 'scoped memory for netfull_forward.1']
    #allocation5 [shape = 'u8[131072]{0}', space=vmem, size = 0x20000, scoped, tag = 'input window, operand 3, single buffered']
    #allocation6 [shape = 's32[1]{0}', space=sflag, size = 0x4, scoped, tag = 'scoped memory for netfull_forward.1']
    #allocation7 [shape = 'u8[8192]{0}', space=vmem, size = 0x2000, scoped, tag = 'output window, operand 0, single buffered']
    %10 = vsyncpa [#allocation3], 0
    %11 = vsyncpa [#allocation6], 0
    %12 = vsyncpa [#allocation4], 0
    // Predicated region
    $region2: #{netfull_forward.1} parent=1 // pred_check
      _
    $region3: #{netfull_forward.1} parent=1 // pred_check_branch
      %14 = sbr.rel (0) target = $region5
    $region4: #{netfull_forward.1} parent=1 // pred_region
      _
    $region5: #{netfull_forward.1} parent=1 // pred_fallthru
      _
    // Predicated region
    $region6: #{netfull_forward.1} parent=1 // pred_check
      _
    $region7: #{netfull_forward.1} parent=1 // pred_check_branch
      %16 = sbr.rel (0) target = $region9
    $region8: #{netfull_forward.1} parent=1 // pred_region
      %18 = vsyncadd [#allocation3], 0
      %s19 = sshll.u32 %s1, 4
      %s20 = int_to_ptr.hbm [resolvable:$true] %s19
      %s21 = sshll.u32 [#allocation2], 4
      %s22 = int_to_ptr.vmem [resolvable:$true] %s21
      %27 = dma.hbm_to_vmem [thread:$0]  %s20, 25088, %s22, [#allocation3], 256, 256, 16
    $region9: #{netfull_forward.1} parent=1 // pred_fallthru
      _
    // Predicated region
    $region10: #{netfull_forward.1} parent=1 // pred_check
      _
    $region11: #{netfull_forward.1} parent=1 // pred_check_branch
      %29 = sbr.rel (0) target = $region13
    $region12: #{netfull_forward.1} parent=1 // pred_region
      _
    $region13: #{netfull_forward.1} parent=1 // pred_fallthru
      _
    // Predicated region
    $region14: #{netfull_forward.1} parent=1 // pred_check
      _
    $region15: #{netfull_forward.1} parent=1 // pred_check_branch
      %31 = sbr.rel (0) target = $region17
    $region16: #{netfull_forward.1} parent=1 // pred_region
      %33 = vsyncadd [#allocation6], 0
      %s34 = sshll.u32 %s3, 4
      %s35 = int_to_ptr.hbm [resolvable:$true] %s34
      %s36 = sshll.u32 [#allocation5], 4
      %s37 = int_to_ptr.vmem [resolvable:$true] %s36
      %42 = dma.hbm_to_vmem [thread:$0]  %s35, 4096, %s37, [#allocation6], 64, 64, 4
    $region17: #{netfull_forward.1} parent=1 // pred_fallthru
      _
    // Predicated region
    $region18: #{netfull_forward.1} parent=1 // pred_check
      _
    $region19: #{netfull_forward.1} parent=1 // pred_check_branch
      %44 = sbr.rel (0) target = $region21
    $region20: #{netfull_forward.1} parent=1 // pred_region
      _
    $region21: #{netfull_forward.1} parent=1 // pred_fallthru
      _
    // Predicated region
    $region22: #{netfull_forward.1} parent=1 // pred_check
      _
    $region23: #{netfull_forward.1} parent=1 // pred_check_branch
      %46 = sbr.rel (0) target = $region25
    $region24: #{netfull_forward.1} parent=1 // pred_region
      %48 = dma.done [#allocation3], 25088
    $region25: #{netfull_forward.1} parent=1 // pred_fallthru
      _
    // Predicated region
    $region26: #{netfull_forward.1} parent=1 // pred_check
      _
    $region27: #{netfull_forward.1} parent=1 // pred_check_branch
      %50 = sbr.rel (0) target = $region29
    $region28: #{netfull_forward.1} parent=1 // pred_region
      %52 = dma.done [#allocation6], 4096
    $region29: #{netfull_forward.1} parent=1 // pred_fallthru
      _
    %v54 = vld [vmem:[%s0] sm:$0xff]
    %v55 = vld [vmem:[%s0 + $0x8] sm:$0x3f]
    %v56 = vld [vmem:[%s0 + $0xe] sm:$0xff]
    %v57 = vld [vmem:[%s0 + $0x16] sm:$0x3f]
    %v58 = vld [vmem:[%s0 + $0x1c] sm:$0xff]
    %v59 = vld [vmem:[%s0 + $0x24] sm:$0x3f]
    %v60 = vld [vmem:[%s0 + $0x2a] sm:$0xff]
    %v61 = vld [vmem:[%s0 + $0x32] sm:$0x3f]
    %v62 = vld [vmem:[%s0 + $0x38] sm:$0xff]
    %v63 = vld [vmem:[%s0 + $0x40] sm:$0x3f]
    %v64 = vld [vmem:[%s0 + $0x46] sm:$0xff]
    %v65 = vld [vmem:[%s0 + $0x4e] sm:$0x3f]
    %v66 = vld [vmem:[%s0 + $0x54] sm:$0xff]
    %v67 = vld [vmem:[%s0 + $0x5c] sm:$0x3f]
    %v68 = vld [vmem:[%s0 + $0x62] sm:$0xff]
    %v69 = vld [vmem:[%s0 + $0x6a] sm:$0x3f]
    %86 = vst [vmem:[#allocation1] ss:$4 sm:$0xff] %v54
    %s87 = scalar_lea.vmem [#allocation1], 1
    %88 = vst [vmem:[%s87] ss:$4 sm:$0xff] %v56
    %s89 = scalar_lea.vmem [#allocation1], 2
    %90 = vst [vmem:[%s89] ss:$4 sm:$0xff] %v58
    %s91 = scalar_lea.vmem [#allocation1], 3
    %92 = vst [vmem:[%s91] ss:$4 sm:$0xff] %v60
    %s93 = scalar_lea.vmem [#allocation1], 32
    %94 = vst [vmem:[%s93] ss:$4 sm:$0xff] %v55
    %s95 = scalar_lea.vmem [#allocation1], 33
    %96 = vst [vmem:[%s95] ss:$4 sm:$0xff] %v57
    %s97 = scalar_lea.vmem [#allocation1], 34
    %98 = vst [vmem:[%s97] ss:$4 sm:$0xff] %v59
    %s99 = scalar_lea.vmem [#allocation1], 35
    %100 = vst [vmem:[%s99] ss:$4 sm:$0xff] %v61
    %v101 = vld.sshfl [vmem:[#allocation1] sm:$0xff pattern:$0x73625140]
    %v102 = vld.sshfl [vmem:[#allocation1 + $0x8] sm:$0xff pattern:$0x73625140]
    %v103 = vld.sshfl [vmem:[#allocation1 + $0x10] sm:$0xff pattern:$0x73625140]
    %v104 = vld.sshfl [vmem:[#allocation1 + $0x18] sm:$0xff pattern:$0x73625140]
    %v105 = vld.sshfl [vmem:[#allocation1 + $0x20] sm:$0xff pattern:$0x73625140]
    %v106 = vld.sshfl [vmem:[#allocation1 + $0x28] sm:$0xff pattern:$0x73625140]
    %v107 = vld.sshfl [vmem:[#allocation1 + $0x30] sm:$0xff pattern:$0x73625140]
    %108 = vst [vmem:[#allocation1] ss:$4 sm:$0xff] %v62
    %109 = vst [vmem:[%s87] ss:$4 sm:$0xff] %v64
    %110 = vst [vmem:[%s89] ss:$4 sm:$0xff] %v66
    %111 = vst [vmem:[%s91] ss:$4 sm:$0xff] %v68
    %112 = vst [vmem:[%s93] ss:$4 sm:$0xff] %v63
    %113 = vst [vmem:[%s95] ss:$4 sm:$0xff] %v65
    %114 = vst [vmem:[%s97] ss:$4 sm:$0xff] %v67
    %115 = vst [vmem:[%s99] ss:$4 sm:$0xff] %v69
    %v116 = vld.sshfl [vmem:[#allocation1] sm:$0xff pattern:$0x73625140]
    %v117 = vld.sshfl [vmem:[#allocation1 + $0x8] sm:$0xff pattern:$0x73625140]
    %v118 = vld.sshfl [vmem:[#allocation1 + $0x10] sm:$0xff pattern:$0x73625140]
    %v119 = vld.sshfl [vmem:[#allocation1 + $0x18] sm:$0xff pattern:$0x73625140]
    %v120 = vld.sshfl [vmem:[#allocation1 + $0x20] sm:$0xff pattern:$0x73625140]
    %v121 = vld.sshfl [vmem:[#allocation1 + $0x28] sm:$0xff pattern:$0x73625140]
    %v122 = vld.sshfl [vmem:[#allocation1 + $0x30] sm:$0xff pattern:$0x73625140]
    %v137 = vpack.c.bf16 %v116, %v101
    %v138 = vpack.c.bf16 %v117, %v102
    %v139 = vpack.c.bf16 %v118, %v103
    %v140 = vpack.c.bf16 %v119, %v104
    %v141 = vpack.c.bf16 %v120, %v105
    %v142 = vpack.c.bf16 %v121, %v106
    %v143 = vpack.c.bf16 %v122, %v107
    %v144 = vld [vmem:[#allocation2] sm:$0xff]
    %v145 = vld [vmem:[#allocation2 + $0x8] sm:$0xff]
    %v146 = vld [vmem:[#allocation2 + $0x10] sm:$0xff]
    %v147 = vld [vmem:[#allocation2 + $0x18] sm:$0xff]
    %v148 = vld [vmem:[#allocation2 + $0x20] sm:$0xff]
    %v149 = vld [vmem:[#allocation2 + $0x28] sm:$0xff]
    %v150 = vld [vmem:[#allocation2 + $0x30] sm:$0xff]
    %v151 = vld [vmem:[#allocation2 + $0x38] sm:$0xff]
    %v152 = vld [vmem:[#allocation2 + $0x40] sm:$0xff]
    %v153 = vld [vmem:[#allocation2 + $0x48] sm:$0xff]
    %v154 = vld [vmem:[#allocation2 + $0x50] sm:$0xff]
    %v155 = vld [vmem:[#allocation2 + $0x58] sm:$0xff]
    %v156 = vld [vmem:[#allocation2 + $0x60] sm:$0xff]
    %v157 = vld [vmem:[#allocation2 + $0x68] sm:$0xff]
    %v158 = vld [vmem:[#allocation2 + $0x70] sm:$0xff]
    %v159 = vld [vmem:[#allocation2 + $0x78] sm:$0xff]
    %v160 = vld [vmem:[#allocation2 + $0x80] sm:$0xff]
    %v161 = vld [vmem:[#allocation2 + $0x88] sm:$0xff]
    %v162 = vld [vmem:[#allocation2 + $0x90] sm:$0xff]
    %v163 = vld [vmem:[#allocation2 + $0x98] sm:$0xff]
    %v164 = vld [vmem:[#allocation2 + $0xa0] sm:$0xff]
    %v165 = vld [vmem:[#allocation2 + $0xa8] sm:$0xff]
    %v166 = vld [vmem:[#allocation2 + $0xb0] sm:$0xff]
    %v167 = vld [vmem:[#allocation2 + $0xb8] sm:$0xff]
    %v168 = vld [vmem:[#allocation2 + $0xc0] sm:$0xff]
    %v169 = vld [vmem:[#allocation2 + $0xc8] sm:$0xff]
    %v170 = vld [vmem:[#allocation2 + $0xd0] sm:$0xff]
    %v171 = vld [vmem:[#allocation2 + $0xd8] sm:$0xff]
    %v172 = vld [vmem:[#allocation2 + $0xe0] sm:$0xff]
    %v173 = vld [vmem:[#allocation2 + $0xe8] sm:$0xff]
    %v174 = vld [vmem:[#allocation2 + $0xf0] sm:$0xff]
    %v175 = vld [vmem:[#allocation2 + $0xf8] sm:$0xff]
    %v176 = vld [vmem:[#allocation2 + $0x100] sm:$0xff]
    %v177 = vld [vmem:[#allocation2 + $0x108] sm:$0xff]
    %v178 = vld [vmem:[#allocation2 + $0x110] sm:$0xff]
    %v179 = vld [vmem:[#allocation2 + $0x118] sm:$0xff]
    %v180 = vld [vmem:[#allocation2 + $0x120] sm:$0xff]
    %v181 = vld [vmem:[#allocation2 + $0x128] sm:$0xff]
    %v182 = vld [vmem:[#allocation2 + $0x130] sm:$0xff]
    %v183 = vld [vmem:[#allocation2 + $0x138] sm:$0xff]
    %v184 = vld [vmem:[#allocation2 + $0x140] sm:$0xff]
    %v185 = vld [vmem:[#allocation2 + $0x148] sm:$0xff]
    %v186 = vld [vmem:[#allocation2 + $0x150] sm:$0xff]
    %v187 = vld [vmem:[#allocation2 + $0x158] sm:$0xff]
    %v188 = vld [vmem:[#allocation2 + $0x160] sm:$0xff]
    %v189 = vld [vmem:[#allocation2 + $0x168] sm:$0xff]
    %v190 = vld [vmem:[#allocation2 + $0x170] sm:$0xff]
    %v191 = vld [vmem:[#allocation2 + $0x178] sm:$0xff]
    %v192 = vld [vmem:[#allocation2 + $0x180] sm:$0xff]
    %v193 = vld [vmem:[#allocation2 + $0x188] sm:$0xff]
    %v194 = vld [vmem:[#allocation2 + $0x190] sm:$0xff]
    %v195 = vld [vmem:[#allocation2 + $0x198] sm:$0xff]
    %v196 = vld [vmem:[#allocation2 + $0x1a0] sm:$0xff]
    %v197 = vld [vmem:[#allocation2 + $0x1a8] sm:$0xff]
    %v198 = vld [vmem:[#allocation2 + $0x1b0] sm:$0xff]
    %v199 = vld [vmem:[#allocation2 + $0x1b8] sm:$0xff]
    %v200 = vld [vmem:[#allocation2 + $0x1c0] sm:$0xff]
    %v201 = vld [vmem:[#allocation2 + $0x1c8] sm:$0xff]
    %v202 = vld [vmem:[#allocation2 + $0x1d0] sm:$0xff]
    %v203 = vld [vmem:[#allocation2 + $0x1d8] sm:$0xff]
    %v204 = vld [vmem:[#allocation2 + $0x1e0] sm:$0xff]
    %v205 = vld [vmem:[#allocation2 + $0x1e8] sm:$0xff]
    %v206 = vld [vmem:[#allocation2 + $0x1f0] sm:$0xff]
    %v207 = vld [vmem:[#allocation2 + $0x1f8] sm:$0xff]
    %v208 = vld [vmem:[#allocation2 + $0x200] sm:$0xff]
    %v209 = vld [vmem:[#allocation2 + $0x208] sm:$0xff]
    %v210 = vld [vmem:[#allocation2 + $0x210] sm:$0xff]
    %v211 = vld [vmem:[#allocation2 + $0x218] sm:$0xff]
    %v212 = vld [vmem:[#allocation2 + $0x220] sm:$0xff]
    %v213 = vld [vmem:[#allocation2 + $0x228] sm:$0xff]
    %v214 = vld [vmem:[#allocation2 + $0x230] sm:$0xff]
    %v215 = vld [vmem:[#allocation2 + $0x238] sm:$0xff]
    %v216 = vld [vmem:[#allocation2 + $0x240] sm:$0xff]
    %v217 = vld [vmem:[#allocation2 + $0x248] sm:$0xff]
    %v218 = vld [vmem:[#allocation2 + $0x250] sm:$0xff]
    %v219 = vld [vmem:[#allocation2 + $0x258] sm:$0xff]
    %v220 = vld [vmem:[#allocation2 + $0x260] sm:$0xff]
    %v221 = vld [vmem:[#allocation2 + $0x268] sm:$0xff]
    %v222 = vld [vmem:[#allocation2 + $0x270] sm:$0xff]
    %v223 = vld [vmem:[#allocation2 + $0x278] sm:$0xff]
    %v224 = vld [vmem:[#allocation2 + $0x280] sm:$0xff]
    %v225 = vld [vmem:[#allocation2 + $0x288] sm:$0xff]
    %v226 = vld [vmem:[#allocation2 + $0x290] sm:$0xff]
    %v227 = vld [vmem:[#allocation2 + $0x298] sm:$0xff]
    %v228 = vld [vmem:[#allocation2 + $0x2a0] sm:$0xff]
    %v229 = vld [vmem:[#allocation2 + $0x2a8] sm:$0xff]
    %v230 = vld [vmem:[#allocation2 + $0x2b0] sm:$0xff]
    %v231 = vld [vmem:[#allocation2 + $0x2b8] sm:$0xff]
    %v232 = vld [vmem:[#allocation2 + $0x2c0] sm:$0xff]
    %v233 = vld [vmem:[#allocation2 + $0x2c8] sm:$0xff]
    %v234 = vld [vmem:[#allocation2 + $0x2d0] sm:$0xff]
    %v235 = vld [vmem:[#allocation2 + $0x2d8] sm:$0xff]
    %v236 = vld [vmem:[#allocation2 + $0x2e0] sm:$0xff]
    %v237 = vld [vmem:[#allocation2 + $0x2e8] sm:$0xff]
    %v238 = vld [vmem:[#allocation2 + $0x2f0] sm:$0xff]
    %v239 = vld [vmem:[#allocation2 + $0x2f8] sm:$0xff]
    %v240 = vld [vmem:[#allocation2 + $0x300] sm:$0xff]
    %v241 = vld [vmem:[#allocation2 + $0x308] sm:$0xff]
    %v242 = vld [vmem:[#allocation2 + $0x310] sm:$0xff]
    %v243 = vld [vmem:[#allocation2 + $0x318] sm:$0xff]
    %v244 = vld [vmem:[#allocation2 + $0x320] sm:$0xff]
    %v245 = vld [vmem:[#allocation2 + $0x328] sm:$0xff]
    %v246 = vld [vmem:[#allocation2 + $0x330] sm:$0xff]
    %v247 = vld [vmem:[#allocation2 + $0x338] sm:$0xff]
    %v248 = vld [vmem:[#allocation2 + $0x340] sm:$0xff]
    %v249 = vld [vmem:[#allocation2 + $0x348] sm:$0xff]
    %v250 = vld [vmem:[#allocation2 + $0x350] sm:$0xff]
    %v251 = vld [vmem:[#allocation2 + $0x358] sm:$0xff]
    %v252 = vld [vmem:[#allocation2 + $0x360] sm:$0xff]
    %v253 = vld [vmem:[#allocation2 + $0x368] sm:$0xff]
    %v254 = vld [vmem:[#allocation2 + $0x370] sm:$0xff]
    %v255 = vld [vmem:[#allocation2 + $0x378] sm:$0xff]
    %v256 = vld [vmem:[#allocation2 + $0x380] sm:$0xff]
    %v257 = vld [vmem:[#allocation2 + $0x388] sm:$0xff]
    %v258 = vld [vmem:[#allocation2 + $0x390] sm:$0xff]
    %v259 = vld [vmem:[#allocation2 + $0x398] sm:$0xff]
    %v260 = vld [vmem:[#allocation2 + $0x3a0] sm:$0xff]
    %v261 = vld [vmem:[#allocation2 + $0x3a8] sm:$0xff]
    %v262 = vld [vmem:[#allocation2 + $0x3b0] sm:$0xff]
    %v263 = vld [vmem:[#allocation2 + $0x3b8] sm:$0xff]
    %v264 = vld [vmem:[#allocation2 + $0x3c0] sm:$0xff]
    %v265 = vld [vmem:[#allocation2 + $0x3c8] sm:$0xff]
    %v266 = vld [vmem:[#allocation2 + $0x3d0] sm:$0xff]
    %v267 = vld [vmem:[#allocation2 + $0x3d8] sm:$0xff]
    %v268 = vld [vmem:[#allocation2 + $0x3e0] sm:$0xff]
    %v269 = vld [vmem:[#allocation2 + $0x3e8] sm:$0xff]
    %v270 = vld [vmem:[#allocation2 + $0x3f0] sm:$0xff]
    %v271 = vld [vmem:[#allocation2 + $0x3f8] sm:$0xff]
    %v272 = vld [vmem:[#allocation2 + $0x400] sm:$0xff]
    %v273 = vld [vmem:[#allocation2 + $0x408] sm:$0xff]
    %v274 = vld [vmem:[#allocation2 + $0x410] sm:$0xff]
    %v275 = vld [vmem:[#allocation2 + $0x418] sm:$0xff]
    %v276 = vld [vmem:[#allocation2 + $0x420] sm:$0xff]
    %v277 = vld [vmem:[#allocation2 + $0x428] sm:$0xff]
    %v278 = vld [vmem:[#allocation2 + $0x430] sm:$0xff]
    %v279 = vld [vmem:[#allocation2 + $0x438] sm:$0xff]
    %v280 = vld [vmem:[#allocation2 + $0x440] sm:$0xff]
    %v281 = vld [vmem:[#allocation2 + $0x448] sm:$0xff]
    %v282 = vld [vmem:[#allocation2 + $0x450] sm:$0xff]
    %v283 = vld [vmem:[#allocation2 + $0x458] sm:$0xff]
    %v284 = vld [vmem:[#allocation2 + $0x460] sm:$0xff]
    %v285 = vld [vmem:[#allocation2 + $0x468] sm:$0xff]
    %v286 = vld [vmem:[#allocation2 + $0x470] sm:$0xff]
    %v287 = vld [vmem:[#allocation2 + $0x478] sm:$0xff]
    %v288 = vld [vmem:[#allocation2 + $0x480] sm:$0xff]
    %v289 = vld [vmem:[#allocation2 + $0x488] sm:$0xff]
    %v290 = vld [vmem:[#allocation2 + $0x490] sm:$0xff]
    %v291 = vld [vmem:[#allocation2 + $0x498] sm:$0xff]
    %v292 = vld [vmem:[#allocation2 + $0x4a0] sm:$0xff]
    %v293 = vld [vmem:[#allocation2 + $0x4a8] sm:$0xff]
    %v294 = vld [vmem:[#allocation2 + $0x4b0] sm:$0xff]
    %v295 = vld [vmem:[#allocation2 + $0x4b8] sm:$0xff]
    %v296 = vld [vmem:[#allocation2 + $0x4c0] sm:$0xff]
    %v297 = vld [vmem:[#allocation2 + $0x4c8] sm:$0xff]
    %v298 = vld [vmem:[#allocation2 + $0x4d0] sm:$0xff]
    %v299 = vld [vmem:[#allocation2 + $0x4d8] sm:$0xff]
    %v300 = vld [vmem:[#allocation2 + $0x4e0] sm:$0xff]
    %v301 = vld [vmem:[#allocation2 + $0x4e8] sm:$0xff]
    %v302 = vld [vmem:[#allocation2 + $0x4f0] sm:$0xff]
    %v303 = vld [vmem:[#allocation2 + $0x4f8] sm:$0xff]
    %v304 = vld [vmem:[#allocation2 + $0x500] sm:$0xff]
    %v305 = vld [vmem:[#allocation2 + $0x508] sm:$0xff]
    %v306 = vld [vmem:[#allocation2 + $0x510] sm:$0xff]
    %v307 = vld [vmem:[#allocation2 + $0x518] sm:$0xff]
    %v308 = vld [vmem:[#allocation2 + $0x520] sm:$0xff]
    %v309 = vld [vmem:[#allocation2 + $0x528] sm:$0xff]
    %v310 = vld [vmem:[#allocation2 + $0x530] sm:$0xff]
    %v311 = vld [vmem:[#allocation2 + $0x538] sm:$0xff]
    %v312 = vld [vmem:[#allocation2 + $0x540] sm:$0xff]
    %v313 = vld [vmem:[#allocation2 + $0x548] sm:$0xff]
    %v314 = vld [vmem:[#allocation2 + $0x550] sm:$0xff]
    %v315 = vld [vmem:[#allocation2 + $0x558] sm:$0xff]
    %v316 = vld [vmem:[#allocation2 + $0x560] sm:$0xff]
    %v317 = vld [vmem:[#allocation2 + $0x568] sm:$0xff]
    %v318 = vld [vmem:[#allocation2 + $0x570] sm:$0xff]
    %v319 = vld [vmem:[#allocation2 + $0x578] sm:$0xff]
    %v320 = vld [vmem:[#allocation2 + $0x580] sm:$0xff]
    %v321 = vld [vmem:[#allocation2 + $0x588] sm:$0xff]
    %v322 = vld [vmem:[#allocation2 + $0x590] sm:$0xff]
    %v323 = vld [vmem:[#allocation2 + $0x598] sm:$0xff]
    %v324 = vld [vmem:[#allocation2 + $0x5a0] sm:$0xff]
    %v325 = vld [vmem:[#allocation2 + $0x5a8] sm:$0xff]
    %v326 = vld [vmem:[#allocation2 + $0x5b0] sm:$0xff]
    %v327 = vld [vmem:[#allocation2 + $0x5b8] sm:$0xff]
    %v328 = vld [vmem:[#allocation2 + $0x5c0] sm:$0xff]
    %v329 = vld [vmem:[#allocation2 + $0x5c8] sm:$0xff]
    %v330 = vld [vmem:[#allocation2 + $0x5d0] sm:$0xff]
    %v331 = vld [vmem:[#allocation2 + $0x5d8] sm:$0xff]
    %v332 = vld [vmem:[#allocation2 + $0x5e0] sm:$0xff]
    %v333 = vld [vmem:[#allocation2 + $0x5e8] sm:$0xff]
    %v334 = vld [vmem:[#allocation2 + $0x5f0] sm:$0xff]
    %v335 = vld [vmem:[#allocation2 + $0x5f8] sm:$0xff]
    %v336 = vld [vmem:[#allocation2 + $0x600] sm:$0xff]
    %v337 = vld [vmem:[#allocation2 + $0x608] sm:$0xff]
    %v338 = vld [vmem:[#allocation2 + $0x610] sm:$0xff]
    %v339 = vld [vmem:[#allocation2 + $0x618] sm:$0xff]
    %v340 = vld [vmem:[%s2] sm:$0xf]
    %v342 = vperm.slane %v340, 0
    %v343 = vperm.slane %v340, 1
    %v344 = vperm.slane %v340, 2
    %v345 = vperm.slane %v340, 3
    %v546 = vunpack.c.l.b16 %v144
    %v547 = vunpack.c.h.b16 %v144
    %v548 = vunpack.c.l.b16 %v145
    %v549 = vunpack.c.h.b16 %v145
    %v550 = vunpack.c.l.b16 %v146
    %v551 = vunpack.c.h.b16 %v146
    %v552 = vunpack.c.l.b16 %v147
    %v553 = vunpack.c.h.b16 %v147
    %v554 = vunpack.c.l.b16 %v148
    %v555 = vunpack.c.h.b16 %v148
    %v556 = vunpack.c.l.b16 %v149
    %v557 = vunpack.c.h.b16 %v149
    %v558 = vunpack.c.l.b16 %v150
    %v559 = vunpack.c.h.b16 %v150
    %v560 = vunpack.c.l.b16 %v151
    %v561 = vunpack.c.h.b16 %v151
    %v562 = vunpack.c.l.b16 %v152
    %v563 = vunpack.c.h.b16 %v152
    %v564 = vunpack.c.l.b16 %v153
    %v565 = vunpack.c.h.b16 %v153
    %v566 = vunpack.c.l.b16 %v154
    %v567 = vunpack.c.h.b16 %v154
    %v568 = vunpack.c.l.b16 %v155
    %v569 = vunpack.c.h.b16 %v155
    %v570 = vunpack.c.l.b16 %v156
    %v571 = vunpack.c.h.b16 %v156
    %v572 = vunpack.c.l.b16 %v157
    %v573 = vunpack.c.h.b16 %v157
    %v574 = vunpack.c.l.b16 %v158
    %v575 = vunpack.c.h.b16 %v158
    %v576 = vunpack.c.l.b16 %v159
    %v577 = vunpack.c.h.b16 %v159
    %v578 = vunpack.c.l.b16 %v160
    %v579 = vunpack.c.h.b16 %v160
    %v580 = vunpack.c.l.b16 %v161
    %v581 = vunpack.c.h.b16 %v161
    %v582 = vunpack.c.l.b16 %v162
    %v583 = vunpack.c.h.b16 %v162
    %v584 = vunpack.c.l.b16 %v163
    %v585 = vunpack.c.h.b16 %v163
    %v586 = vunpack.c.l.b16 %v164
    %v587 = vunpack.c.h.b16 %v164
    %v588 = vunpack.c.l.b16 %v165
    %v589 = vunpack.c.h.b16 %v165
    %v590 = vunpack.c.l.b16 %v166
    %v591 = vunpack.c.h.b16 %v166
    %v592 = vunpack.c.l.b16 %v167
    %v593 = vunpack.c.h.b16 %v167
    %v594 = vunpack.c.l.b16 %v168
    %v595 = vunpack.c.h.b16 %v168
    %v596 = vunpack.c.l.b16 %v169
    %v597 = vunpack.c.h.b16 %v169
    %v598 = vunpack.c.l.b16 %v170
    %v599 = vunpack.c.h.b16 %v170
    %v600 = vunpack.c.l.b16 %v171
    %v601 = vunpack.c.h.b16 %v171
    %v602 = vunpack.c.l.b16 %v172
    %v603 = vunpack.c.h.b16 %v172
    %v604 = vunpack.c.l.b16 %v173
    %v605 = vunpack.c.h.b16 %v173
    %v606 = vunpack.c.l.b16 %v174
    %v607 = vunpack.c.h.b16 %v174
    %v608 = vunpack.c.l.b16 %v175
    %v609 = vunpack.c.h.b16 %v175
    %v610 = vunpack.c.l.b16 %v176
    %v611 = vunpack.c.h.b16 %v176
    %v612 = vunpack.c.l.b16 %v177
    %v613 = vunpack.c.h.b16 %v177
    %v614 = vunpack.c.l.b16 %v178
    %v615 = vunpack.c.h.b16 %v178
    %v616 = vunpack.c.l.b16 %v179
    %v617 = vunpack.c.h.b16 %v179
    %v618 = vunpack.c.l.b16 %v180
    %v619 = vunpack.c.h.b16 %v180
    %v620 = vunpack.c.l.b16 %v181
    %v621 = vunpack.c.h.b16 %v181
    %v622 = vunpack.c.l.b16 %v182
    %v623 = vunpack.c.h.b16 %v182
    %v624 = vunpack.c.l.b16 %v183
    %v625 = vunpack.c.h.b16 %v183
    %v626 = vunpack.c.l.b16 %v184
    %v627 = vunpack.c.h.b16 %v184
    %v628 = vunpack.c.l.b16 %v185
    %v629 = vunpack.c.h.b16 %v185
    %v630 = vunpack.c.l.b16 %v186
    %v631 = vunpack.c.h.b16 %v186
    %v632 = vunpack.c.l.b16 %v187
    %v633 = vunpack.c.h.b16 %v187
    %v634 = vunpack.c.l.b16 %v188
    %v635 = vunpack.c.h.b16 %v188
    %v636 = vunpack.c.l.b16 %v189
    %v637 = vunpack.c.h.b16 %v189
    %v638 = vunpack.c.l.b16 %v190
    %v639 = vunpack.c.h.b16 %v190
    %v640 = vunpack.c.l.b16 %v191
    %v641 = vunpack.c.h.b16 %v191
    %v642 = vunpack.c.l.b16 %v192
    %v643 = vunpack.c.h.b16 %v192
    %v644 = vunpack.c.l.b16 %v193
    %v645 = vunpack.c.h.b16 %v193
    %v646 = vunpack.c.l.b16 %v194
    %v647 = vunpack.c.h.b16 %v194
    %v648 = vunpack.c.l.b16 %v195
    %v649 = vunpack.c.h.b16 %v195
    %v650 = vunpack.c.l.b16 %v196
    %v651 = vunpack.c.h.b16 %v196
    %v652 = vunpack.c.l.b16 %v197
    %v653 = vunpack.c.h.b16 %v197
    %v654 = vunpack.c.l.b16 %v198
    %v655 = vunpack.c.h.b16 %v198
    %v656 = vunpack.c.l.b16 %v199
    %v657 = vunpack.c.h.b16 %v199
    %v658 = vunpack.c.l.b16 %v200
    %v659 = vunpack.c.h.b16 %v200
    %v660 = vunpack.c.l.b16 %v201
    %v661 = vunpack.c.h.b16 %v201
    %v662 = vunpack.c.l.b16 %v202
    %v663 = vunpack.c.h.b16 %v202
    %v664 = vunpack.c.l.b16 %v203
    %v665 = vunpack.c.h.b16 %v203
    %v666 = vunpack.c.l.b16 %v204
    %v667 = vunpack.c.h.b16 %v204
    %v668 = vunpack.c.l.b16 %v205
    %v669 = vunpack.c.h.b16 %v205
    %v670 = vunpack.c.l.b16 %v206
    %v671 = vunpack.c.h.b16 %v206
    %v672 = vunpack.c.l.b16 %v207
    %v673 = vunpack.c.h.b16 %v207
    %v674 = vunpack.c.l.b16 %v208
    %v675 = vunpack.c.h.b16 %v208
    %v676 = vunpack.c.l.b16 %v209
    %v677 = vunpack.c.h.b16 %v209
    %v678 = vunpack.c.l.b16 %v210
    %v679 = vunpack.c.h.b16 %v210
    %v680 = vunpack.c.l.b16 %v211
    %v681 = vunpack.c.h.b16 %v211
    %v682 = vunpack.c.l.b16 %v212
    %v683 = vunpack.c.h.b16 %v212
    %v684 = vunpack.c.l.b16 %v213
    %v685 = vunpack.c.h.b16 %v213
    %v686 = vunpack.c.l.b16 %v214
    %v687 = vunpack.c.h.b16 %v214
    %v688 = vunpack.c.l.b16 %v215
    %v689 = vunpack.c.h.b16 %v215
    %v690 = vunpack.c.l.b16 %v216
    %v691 = vunpack.c.h.b16 %v216
    %v692 = vunpack.c.l.b16 %v217
    %v693 = vunpack.c.h.b16 %v217
    %v694 = vunpack.c.l.b16 %v218
    %v695 = vunpack.c.h.b16 %v218
    %v696 = vunpack.c.l.b16 %v219
    %v697 = vunpack.c.h.b16 %v219
    %v698 = vunpack.c.l.b16 %v220
    %v699 = vunpack.c.h.b16 %v220
    %v700 = vunpack.c.l.b16 %v221
    %v701 = vunpack.c.h.b16 %v221
    %v702 = vunpack.c.l.b16 %v222
    %v703 = vunpack.c.h.b16 %v222
    %v704 = vunpack.c.l.b16 %v223
    %v705 = vunpack.c.h.b16 %v223
    %v706 = vunpack.c.l.b16 %v224
    %v707 = vunpack.c.h.b16 %v224
    %v708 = vunpack.c.l.b16 %v225
    %v709 = vunpack.c.h.b16 %v225
    %v710 = vunpack.c.l.b16 %v226
    %v711 = vunpack.c.h.b16 %v226
    %v712 = vunpack.c.l.b16 %v227
    %v713 = vunpack.c.h.b16 %v227
    %v714 = vunpack.c.l.b16 %v228
    %v715 = vunpack.c.h.b16 %v228
    %v716 = vunpack.c.l.b16 %v229
    %v717 = vunpack.c.h.b16 %v229
    %v718 = vunpack.c.l.b16 %v230
    %v719 = vunpack.c.h.b16 %v230
    %v720 = vunpack.c.l.b16 %v231
    %v721 = vunpack.c.h.b16 %v231
    %v722 = vunpack.c.l.b16 %v232
    %v723 = vunpack.c.h.b16 %v232
    %v724 = vunpack.c.l.b16 %v233
    %v725 = vunpack.c.h.b16 %v233
    %v726 = vunpack.c.l.b16 %v234
    %v727 = vunpack.c.h.b16 %v234
    %v728 = vunpack.c.l.b16 %v235
    %v729 = vunpack.c.h.b16 %v235
    %v730 = vunpack.c.l.b16 %v236
    %v731 = vunpack.c.h.b16 %v236
    %v732 = vunpack.c.l.b16 %v237
    %v733 = vunpack.c.h.b16 %v237
    %v734 = vunpack.c.l.b16 %v238
    %v735 = vunpack.c.h.b16 %v238
    %v736 = vunpack.c.l.b16 %v239
    %v737 = vunpack.c.h.b16 %v239
    %v738 = vunpack.c.l.b16 %v240
    %v739 = vunpack.c.h.b16 %v240
    %v740 = vunpack.c.l.b16 %v241
    %v741 = vunpack.c.h.b16 %v241
    %v742 = vunpack.c.l.b16 %v242
    %v743 = vunpack.c.h.b16 %v242
    %v744 = vunpack.c.l.b16 %v243
    %v745 = vunpack.c.h.b16 %v243
    %v746 = vunpack.c.l.b16 %v244
    %v747 = vunpack.c.h.b16 %v244
    %v748 = vunpack.c.l.b16 %v245
    %v749 = vunpack.c.h.b16 %v245
    %v750 = vunpack.c.l.b16 %v246
    %v751 = vunpack.c.h.b16 %v246
    %v752 = vunpack.c.l.b16 %v247
    %v753 = vunpack.c.h.b16 %v247
    %v754 = vunpack.c.l.b16 %v248
    %v755 = vunpack.c.h.b16 %v248
    %v756 = vunpack.c.l.b16 %v249
    %v757 = vunpack.c.h.b16 %v249
    %v758 = vunpack.c.l.b16 %v250
    %v759 = vunpack.c.h.b16 %v250
    %v760 = vunpack.c.l.b16 %v251
    %v761 = vunpack.c.h.b16 %v251
    %v762 = vunpack.c.l.b16 %v252
    %v763 = vunpack.c.h.b16 %v252
    %v764 = vunpack.c.l.b16 %v253
    %v765 = vunpack.c.h.b16 %v253
    %v766 = vunpack.c.l.b16 %v254
    %v767 = vunpack.c.h.b16 %v254
    %v768 = vunpack.c.l.b16 %v255
    %v769 = vunpack.c.h.b16 %v255
    %v770 = vunpack.c.l.b16 %v256
    %v771 = vunpack.c.h.b16 %v256
    %v772 = vunpack.c.l.b16 %v257
    %v773 = vunpack.c.h.b16 %v257
    %v774 = vunpack.c.l.b16 %v258
    %v775 = vunpack.c.h.b16 %v258
    %v776 = vunpack.c.l.b16 %v259
    %v777 = vunpack.c.h.b16 %v259
    %v778 = vunpack.c.l.b16 %v260
    %v779 = vunpack.c.h.b16 %v260
    %v780 = vunpack.c.l.b16 %v261
    %v781 = vunpack.c.h.b16 %v261
    %v782 = vunpack.c.l.b16 %v262
    %v783 = vunpack.c.h.b16 %v262
    %v784 = vunpack.c.l.b16 %v263
    %v785 = vunpack.c.h.b16 %v263
    %v786 = vunpack.c.l.b16 %v264
    %v787 = vunpack.c.h.b16 %v264
    %v788 = vunpack.c.l.b16 %v265
    %v789 = vunpack.c.h.b16 %v265
    %v790 = vunpack.c.l.b16 %v266
    %v791 = vunpack.c.h.b16 %v266
    %v792 = vunpack.c.l.b16 %v267
    %v793 = vunpack.c.h.b16 %v267
    %v794 = vunpack.c.l.b16 %v268
    %v795 = vunpack.c.h.b16 %v268
    %v796 = vunpack.c.l.b16 %v269
    %v797 = vunpack.c.h.b16 %v269
    %v798 = vunpack.c.l.b16 %v270
    %v799 = vunpack.c.h.b16 %v270
    %v800 = vunpack.c.l.b16 %v271
    %v801 = vunpack.c.h.b16 %v271
    %v802 = vunpack.c.l.b16 %v272
    %v803 = vunpack.c.h.b16 %v272
    %v804 = vunpack.c.l.b16 %v273
    %v805 = vunpack.c.h.b16 %v273
    %v806 = vunpack.c.l.b16 %v274
    %v807 = vunpack.c.h.b16 %v274
    %v808 = vunpack.c.l.b16 %v275
    %v809 = vunpack.c.h.b16 %v275
    %v810 = vunpack.c.l.b16 %v276
    %v811 = vunpack.c.h.b16 %v276
    %v812 = vunpack.c.l.b16 %v277
    %v813 = vunpack.c.h.b16 %v277
    %v814 = vunpack.c.l.b16 %v278
    %v815 = vunpack.c.h.b16 %v278
    %v816 = vunpack.c.l.b16 %v279
    %v817 = vunpack.c.h.b16 %v279
    %v818 = vunpack.c.l.b16 %v280
    %v819 = vunpack.c.h.b16 %v280
    %v820 = vunpack.c.l.b16 %v281
    %v821 = vunpack.c.h.b16 %v281
    %v822 = vunpack.c.l.b16 %v282
    %v823 = vunpack.c.h.b16 %v282
    %v824 = vunpack.c.l.b16 %v283
    %v825 = vunpack.c.h.b16 %v283
    %v826 = vunpack.c.l.b16 %v284
    %v827 = vunpack.c.h.b16 %v284
    %v828 = vunpack.c.l.b16 %v285
    %v829 = vunpack.c.h.b16 %v285
    %v830 = vunpack.c.l.b16 %v286
    %v831 = vunpack.c.h.b16 %v286
    %v832 = vunpack.c.l.b16 %v287
    %v833 = vunpack.c.h.b16 %v287
    %v834 = vunpack.c.l.b16 %v288
    %v835 = vunpack.c.h.b16 %v288
    %v836 = vunpack.c.l.b16 %v289
    %v837 = vunpack.c.h.b16 %v289
    %v838 = vunpack.c.l.b16 %v290
    %v839 = vunpack.c.h.b16 %v290
    %v840 = vunpack.c.l.b16 %v291
    %v841 = vunpack.c.h.b16 %v291
    %v842 = vunpack.c.l.b16 %v292
    %v843 = vunpack.c.h.b16 %v292
    %v844 = vunpack.c.l.b16 %v293
    %v845 = vunpack.c.h.b16 %v293
    %v846 = vunpack.c.l.b16 %v294
    %v847 = vunpack.c.h.b16 %v294
    %v848 = vunpack.c.l.b16 %v295
    %v849 = vunpack.c.h.b16 %v295
    %v850 = vunpack.c.l.b16 %v296
    %v851 = vunpack.c.h.b16 %v296
    %v852 = vunpack.c.l.b16 %v297
    %v853 = vunpack.c.h.b16 %v297
    %v854 = vunpack.c.l.b16 %v298
    %v855 = vunpack.c.h.b16 %v298
    %v856 = vunpack.c.l.b16 %v299
    %v857 = vunpack.c.h.b16 %v299
    %v858 = vunpack.c.l.b16 %v300
    %v859 = vunpack.c.h.b16 %v300
    %v860 = vunpack.c.l.b16 %v301
    %v861 = vunpack.c.h.b16 %v301
    %v862 = vunpack.c.l.b16 %v302
    %v863 = vunpack.c.h.b16 %v302
    %v864 = vunpack.c.l.b16 %v303
    %v865 = vunpack.c.h.b16 %v303
    %v866 = vunpack.c.l.b16 %v304
    %v867 = vunpack.c.h.b16 %v304
    %v868 = vunpack.c.l.b16 %v305
    %v869 = vunpack.c.h.b16 %v305
    %v870 = vunpack.c.l.b16 %v306
    %v871 = vunpack.c.h.b16 %v306
    %v872 = vunpack.c.l.b16 %v307
    %v873 = vunpack.c.h.b16 %v307
    %v874 = vunpack.c.l.b16 %v308
    %v875 = vunpack.c.h.b16 %v308
    %v876 = vunpack.c.l.b16 %v309
    %v877 = vunpack.c.h.b16 %v309
    %v878 = vunpack.c.l.b16 %v310
    %v879 = vunpack.c.h.b16 %v310
    %v880 = vunpack.c.l.b16 %v311
    %v881 = vunpack.c.h.b16 %v311
    %v882 = vunpack.c.l.b16 %v312
    %v883 = vunpack.c.h.b16 %v312
    %v884 = vunpack.c.l.b16 %v313
    %v885 = vunpack.c.h.b16 %v313
    %v886 = vunpack.c.l.b16 %v314
    %v887 = vunpack.c.h.b16 %v314
    %v888 = vunpack.c.l.b16 %v315
    %v889 = vunpack.c.h.b16 %v315
    %v890 = vunpack.c.l.b16 %v316
    %v891 = vunpack.c.h.b16 %v316
    %v892 = vunpack.c.l.b16 %v317
    %v893 = vunpack.c.h.b16 %v317
    %v894 = vunpack.c.l.b16 %v318
    %v895 = vunpack.c.h.b16 %v318
    %v896 = vunpack.c.l.b16 %v319
    %v897 = vunpack.c.h.b16 %v319
    %v898 = vunpack.c.l.b16 %v320
    %v899 = vunpack.c.h.b16 %v320
    %v900 = vunpack.c.l.b16 %v321
    %v901 = vunpack.c.h.b16 %v321
    %v902 = vunpack.c.l.b16 %v322
    %v903 = vunpack.c.h.b16 %v322
    %v904 = vunpack.c.l.b16 %v323
    %v905 = vunpack.c.h.b16 %v323
    %v906 = vunpack.c.l.b16 %v324
    %v907 = vunpack.c.h.b16 %v324
    %v908 = vunpack.c.l.b16 %v325
    %v909 = vunpack.c.h.b16 %v325
    %v910 = vunpack.c.l.b16 %v326
    %v911 = vunpack.c.h.b16 %v326
    %v912 = vunpack.c.l.b16 %v327
    %v913 = vunpack.c.h.b16 %v327
    %v914 = vunpack.c.l.b16 %v328
    %v915 = vunpack.c.h.b16 %v328
    %v916 = vunpack.c.l.b16 %v329
    %v917 = vunpack.c.h.b16 %v329
    %v918 = vunpack.c.l.b16 %v330
    %v919 = vunpack.c.h.b16 %v330
    %v920 = vunpack.c.l.b16 %v331
    %v921 = vunpack.c.h.b16 %v331
    %v922 = vunpack.c.l.b16 %v332
    %v923 = vunpack.c.h.b16 %v332
    %v924 = vunpack.c.l.b16 %v333
    %v925 = vunpack.c.h.b16 %v333
    %v926 = vunpack.c.l.b16 %v334
    %v927 = vunpack.c.h.b16 %v334
    %v928 = vunpack.c.l.b16 %v335
    %v929 = vunpack.c.h.b16 %v335
    %v930 = vunpack.c.l.b16 %v336
    %v931 = vunpack.c.h.b16 %v336
    %v932 = vunpack.c.l.b16 %v337
    %v933 = vunpack.c.h.b16 %v337
    %v934 = vunpack.c.l.b16 %v338
    %v935 = vunpack.c.h.b16 %v338
    %v936 = vunpack.c.l.b16 %v339
    %v937 = vunpack.c.h.b16 %v339
    %v938 = vpack.c.b16 %v550, %v546
    %v939 = vpack.c.b16 %v551, %v547
    %v940 = vpack.c.b16 %v552, %v548
    %v941 = vpack.c.b16 %v553, %v549
    %v942 = vpack.c.b16 %v558, %v554
    %v943 = vpack.c.b16 %v559, %v555
    %v944 = vpack.c.b16 %v560, %v556
    %v945 = vpack.c.b16 %v561, %v557
    %v946 = vpack.c.b16 %v566, %v562
    %v947 = vpack.c.b16 %v567, %v563
    %v948 = vpack.c.b16 %v568, %v564
    %v949 = vpack.c.b16 %v569, %v565
    %v950 = vpack.c.b16 %v574, %v570
    %v951 = vpack.c.b16 %v575, %v571
    %v952 = vpack.c.b16 %v576, %v572
    %v953 = vpack.c.b16 %v577, %v573
    %v954 = vpack.c.b16 %v582, %v578
    %v955 = vpack.c.b16 %v583, %v579
    %v956 = vpack.c.b16 %v584, %v580
    %v957 = vpack.c.b16 %v585, %v581
    %v958 = vpack.c.b16 %v590, %v586
    %v959 = vpack.c.b16 %v591, %v587
    %v960 = vpack.c.b16 %v592, %v588
    %v961 = vpack.c.b16 %v593, %v589
    %v962 = vpack.c.b16 %v598, %v594
    %v963 = vpack.c.b16 %v599, %v595
    %v964 = vpack.c.b16 %v600, %v596
    %v965 = vpack.c.b16 %v601, %v597
    %v966 = vpack.c.b16 %v606, %v602
    %v967 = vpack.c.b16 %v607, %v603
    %v968 = vpack.c.b16 %v608, %v604
    %v969 = vpack.c.b16 %v609, %v605
    %v970 = vpack.c.b16 %v614, %v610
    %v971 = vpack.c.b16 %v615, %v611
    %v972 = vpack.c.b16 %v616, %v612
    %v973 = vpack.c.b16 %v617, %v613
    %v974 = vpack.c.b16 %v622, %v618
    %v975 = vpack.c.b16 %v623, %v619
    %v976 = vpack.c.b16 %v624, %v620
    %v977 = vpack.c.b16 %v625, %v621
    %v978 = vpack.c.b16 %v630, %v626
    %v979 = vpack.c.b16 %v631, %v627
    %v980 = vpack.c.b16 %v632, %v628
    %v981 = vpack.c.b16 %v633, %v629
    %v982 = vpack.c.b16 %v638, %v634
    %v983 = vpack.c.b16 %v639, %v635
    %v984 = vpack.c.b16 %v640, %v636
    %v985 = vpack.c.b16 %v641, %v637
    %v986 = vpack.c.b16 %v646, %v642
    %v987 = vpack.c.b16 %v647, %v643
    %v988 = vpack.c.b16 %v648, %v644
    %v989 = vpack.c.b16 %v649, %v645
    %v990 = vpack.c.b16 %v654, %v650
    %v991 = vpack.c.b16 %v655, %v651
    %v992 = vpack.c.b16 %v656, %v652
    %v993 = vpack.c.b16 %v657, %v653
    %v994 = vpack.c.b16 %v662, %v658
    %v995 = vpack.c.b16 %v663, %v659
    %v996 = vpack.c.b16 %v664, %v660
    %v997 = vpack.c.b16 %v665, %v661
    %v998 = vpack.c.b16 %v670, %v666
    %v999 = vpack.c.b16 %v671, %v667
    %v1000 = vpack.c.b16 %v672, %v668
    %v1001 = vpack.c.b16 %v673, %v669
    %v1002 = vpack.c.b16 %v678, %v674
    %v1003 = vpack.c.b16 %v679, %v675
    %v1004 = vpack.c.b16 %v680, %v676
    %v1005 = vpack.c.b16 %v681, %v677
    %v1006 = vpack.c.b16 %v686, %v682
    %v1007 = vpack.c.b16 %v687, %v683
    %v1008 = vpack.c.b16 %v688, %v684
    %v1009 = vpack.c.b16 %v689, %v685
    %v1010 = vpack.c.b16 %v694, %v690
    %v1011 = vpack.c.b16 %v695, %v691
    %v1012 = vpack.c.b16 %v696, %v692
    %v1013 = vpack.c.b16 %v697, %v693
    %v1014 = vpack.c.b16 %v702, %v698
    %v1015 = vpack.c.b16 %v703, %v699
    %v1016 = vpack.c.b16 %v704, %v700
    %v1017 = vpack.c.b16 %v705, %v701
    %v1018 = vpack.c.b16 %v710, %v706
    %v1019 = vpack.c.b16 %v711, %v707
    %v1020 = vpack.c.b16 %v712, %v708
    %v1021 = vpack.c.b16 %v713, %v709
    %v1022 = vpack.c.b16 %v718, %v714
    %v1023 = vpack.c.b16 %v719, %v715
    %v1024 = vpack.c.b16 %v720, %v716
    %v1025 = vpack.c.b16 %v721, %v717
    %v1026 = vpack.c.b16 %v726, %v722
    %v1027 = vpack.c.b16 %v727, %v723
    %v1028 = vpack.c.b16 %v728, %v724
    %v1029 = vpack.c.b16 %v729, %v725
    %v1030 = vpack.c.b16 %v734, %v730
    %v1031 = vpack.c.b16 %v735, %v731
    %v1032 = vpack.c.b16 %v736, %v732
    %v1033 = vpack.c.b16 %v737, %v733
    %v1034 = vpack.c.b16 %v742, %v738
    %v1035 = vpack.c.b16 %v743, %v739
    %v1036 = vpack.c.b16 %v744, %v740
    %v1037 = vpack.c.b16 %v745, %v741
    %v1038 = vpack.c.b16 %v750, %v746
    %v1039 = vpack.c.b16 %v751, %v747
    %v1040 = vpack.c.b16 %v752, %v748
    %v1041 = vpack.c.b16 %v753, %v749
    %v1042 = vpack.c.b16 %v758, %v754
    %v1043 = vpack.c.b16 %v759, %v755
    %v1044 = vpack.c.b16 %v760, %v756
    %v1045 = vpack.c.b16 %v761, %v757
    %v1046 = vpack.c.b16 %v766, %v762
    %v1047 = vpack.c.b16 %v767, %v763
    %v1048 = vpack.c.b16 %v768, %v764
    %v1049 = vpack.c.b16 %v769, %v765
    %v1050 = vpack.c.b16 %v774, %v770
    %v1051 = vpack.c.b16 %v775, %v771
    %v1052 = vpack.c.b16 %v776, %v772
    %v1053 = vpack.c.b16 %v777, %v773
    %v1054 = vpack.c.b16 %v782, %v778
    %v1055 = vpack.c.b16 %v783, %v779
    %v1056 = vpack.c.b16 %v784, %v780
    %v1057 = vpack.c.b16 %v785, %v781
    %v1058 = vpack.c.b16 %v790, %v786
    %v1059 = vpack.c.b16 %v791, %v787
    %v1060 = vpack.c.b16 %v792, %v788
    %v1061 = vpack.c.b16 %v793, %v789
    %v1062 = vpack.c.b16 %v798, %v794
    %v1063 = vpack.c.b16 %v799, %v795
    %v1064 = vpack.c.b16 %v800, %v796
    %v1065 = vpack.c.b16 %v801, %v797
    %v1066 = vpack.c.b16 %v806, %v802
    %v1067 = vpack.c.b16 %v807, %v803
    %v1068 = vpack.c.b16 %v808, %v804
    %v1069 = vpack.c.b16 %v809, %v805
    %v1070 = vpack.c.b16 %v814, %v810
    %v1071 = vpack.c.b16 %v815, %v811
    %v1072 = vpack.c.b16 %v816, %v812
    %v1073 = vpack.c.b16 %v817, %v813
    %v1074 = vpack.c.b16 %v822, %v818
    %v1075 = vpack.c.b16 %v823, %v819
    %v1076 = vpack.c.b16 %v824, %v820
    %v1077 = vpack.c.b16 %v825, %v821
    %v1078 = vpack.c.b16 %v830, %v826
    %v1079 = vpack.c.b16 %v831, %v827
    %v1080 = vpack.c.b16 %v832, %v828
    %v1081 = vpack.c.b16 %v833, %v829
    %v1082 = vpack.c.b16 %v838, %v834
    %v1083 = vpack.c.b16 %v839, %v835
    %v1084 = vpack.c.b16 %v840, %v836
    %v1085 = vpack.c.b16 %v841, %v837
    %v1086 = vpack.c.b16 %v846, %v842
    %v1087 = vpack.c.b16 %v847, %v843
    %v1088 = vpack.c.b16 %v848, %v844
    %v1089 = vpack.c.b16 %v849, %v845
    %v1090 = vpack.c.b16 %v854, %v850
    %v1091 = vpack.c.b16 %v855, %v851
    %v1092 = vpack.c.b16 %v856, %v852
    %v1093 = vpack.c.b16 %v857, %v853
    %v1094 = vpack.c.b16 %v862, %v858
    %v1095 = vpack.c.b16 %v863, %v859
    %v1096 = vpack.c.b16 %v864, %v860
    %v1097 = vpack.c.b16 %v865, %v861
    %v1098 = vpack.c.b16 %v870, %v866
    %v1099 = vpack.c.b16 %v871, %v867
    %v1100 = vpack.c.b16 %v872, %v868
    %v1101 = vpack.c.b16 %v873, %v869
    %v1102 = vpack.c.b16 %v878, %v874
    %v1103 = vpack.c.b16 %v879, %v875
    %v1104 = vpack.c.b16 %v880, %v876
    %v1105 = vpack.c.b16 %v881, %v877
    %v1106 = vpack.c.b16 %v886, %v882
    %v1107 = vpack.c.b16 %v887, %v883
    %v1108 = vpack.c.b16 %v888, %v884
    %v1109 = vpack.c.b16 %v889, %v885
    %v1110 = vpack.c.b16 %v894, %v890
    %v1111 = vpack.c.b16 %v895, %v891
    %v1112 = vpack.c.b16 %v896, %v892
    %v1113 = vpack.c.b16 %v897, %v893
    %v1114 = vpack.c.b16 %v902, %v898
    %v1115 = vpack.c.b16 %v903, %v899
    %v1116 = vpack.c.b16 %v904, %v900
    %v1117 = vpack.c.b16 %v905, %v901
    %v1118 = vpack.c.b16 %v910, %v906
    %v1119 = vpack.c.b16 %v911, %v907
    %v1120 = vpack.c.b16 %v912, %v908
    %v1121 = vpack.c.b16 %v913, %v909
    %v1122 = vpack.c.b16 %v918, %v914
    %v1123 = vpack.c.b16 %v919, %v915
    %v1124 = vpack.c.b16 %v920, %v916
    %v1125 = vpack.c.b16 %v921, %v917
    %v1126 = vpack.c.b16 %v926, %v922
    %v1127 = vpack.c.b16 %v927, %v923
    %v1128 = vpack.c.b16 %v928, %v924
    %v1129 = vpack.c.b16 %v929, %v925
    %v1130 = vpack.c.b16 %v934, %v930
    %v1131 = vpack.c.b16 %v935, %v931
    %v1132 = vpack.c.b16 %v936, %v932
    %v1133 = vpack.c.b16 %v937, %v933
    %vm1330 = vcmask 130048
    %v1332 = vsel %vm1330, %v143, 0
    %1334 = vmatpush.bf16.msra.mxu0 %v966
    %1335 = vmatpush.bf16.msra.mxu0 %v962
    %1336 = vmatpush.bf16.msra.mxu0 %v958
    %1337 = vmatpush.bf16.msra.mxu0 %v954
    %1338 = vmatpush.bf16.msra.mxu0 %v950
    %1339 = vmatpush.bf16.msra.mxu0 %v946
    %1340 = vmatpush.bf16.msra.mxu0 %v942
    %1341 = vmatpush.bf16.msra.mxu0 %v938
    %1342 = vmatmul.bf16.gmra.mxu0 %v137
    %v1343 = vpop.f32.mrf.mxu0
    %v1344 = vadd.f32 %v342, %v1343
    %v1345 = vpop.f32.mrf.mxu0
    %v1346 = vadd.f32 %v342, %v1345
    %1347 = vdwg.mxu0
    %1348 = vmatpush.bf16.msra.mxu0 %v998
    %1349 = vmatpush.bf16.msra.mxu0 %v994
    %1350 = vmatpush.bf16.msra.mxu0 %v990
    %1351 = vmatpush.bf16.msra.mxu0 %v986
    %1352 = vmatpush.bf16.msra.mxu0 %v982
    %1353 = vmatpush.bf16.msra.mxu0 %v978
    %1354 = vmatpush.bf16.msra.mxu0 %v974
    %1355 = vmatpush.bf16.msra.mxu0 %v970
    %1356 = vmatmul.bf16.gmra.mxu0 %v138
    %v1357 = vpop.f32.mrf.mxu0
    %v1358 = vadd.f32 %v1344, %v1357
    %v1359 = vpop.f32.mrf.mxu0
    %v1360 = vadd.f32 %v1346, %v1359
    %1361 = vdwg.mxu0
    %1362 = vmatpush.bf16.msra.mxu0 %v1030
    %1363 = vmatpush.bf16.msra.mxu0 %v1026
    %1364 = vmatpush.bf16.msra.mxu0 %v1022
    %1365 = vmatpush.bf16.msra.mxu0 %v1018
    %1366 = vmatpush.bf16.msra.mxu0 %v1014
    %1367 = vmatpush.bf16.msra.mxu0 %v1010
    %1368 = vmatpush.bf16.msra.mxu0 %v1006
    %1369 = vmatpush.bf16.msra.mxu0 %v1002
    %1370 = vmatmul.bf16.gmra.mxu0 %v139
    %v1371 = vpop.f32.mrf.mxu0
    %v1372 = vadd.f32 %v1358, %v1371
    %v1373 = vpop.f32.mrf.mxu0
    %v1374 = vadd.f32 %v1360, %v1373
    %1375 = vdwg.mxu0
    %1376 = vmatpush.bf16.msra.mxu0 %v1062
    %1377 = vmatpush.bf16.msra.mxu0 %v1058
    %1378 = vmatpush.bf16.msra.mxu0 %v1054
    %1379 = vmatpush.bf16.msra.mxu0 %v1050
    %1380 = vmatpush.bf16.msra.mxu0 %v1046
    %1381 = vmatpush.bf16.msra.mxu0 %v1042
    %1382 = vmatpush.bf16.msra.mxu0 %v1038
    %1383 = vmatpush.bf16.msra.mxu0 %v1034
    %1384 = vmatmul.bf16.gmra.mxu0 %v140
    %v1385 = vpop.f32.mrf.mxu0
    %v1386 = vadd.f32 %v1372, %v1385
    %v1387 = vpop.f32.mrf.mxu0
    %v1388 = vadd.f32 %v1374, %v1387
    %1389 = vdwg.mxu0
    %1390 = vmatpush.bf16.msra.mxu0 %v1094
    %1391 = vmatpush.bf16.msra.mxu0 %v1090
    %1392 = vmatpush.bf16.msra.mxu0 %v1086
    %1393 = vmatpush.bf16.msra.mxu0 %v1082
    %1394 = vmatpush.bf16.msra.mxu0 %v1078
    %1395 = vmatpush.bf16.msra.mxu0 %v1074
    %1396 = vmatpush.bf16.msra.mxu0 %v1070
    %1397 = vmatpush.bf16.msra.mxu0 %v1066
    %1398 = vmatmul.bf16.gmra.mxu0 %v141
    %v1399 = vpop.f32.mrf.mxu0
    %v1400 = vadd.f32 %v1386, %v1399
    %v1401 = vpop.f32.mrf.mxu0
    %v1402 = vadd.f32 %v1388, %v1401
    %1403 = vdwg.mxu0
    %1404 = vmatpush.bf16.msra.mxu0 %v1126
    %1405 = vmatpush.bf16.msra.mxu0 %v1122
    %1406 = vmatpush.bf16.msra.mxu0 %v1118
    %1407 = vmatpush.bf16.msra.mxu0 %v1114
    %1408 = vmatpush.bf16.msra.mxu0 %v1110
    %1409 = vmatpush.bf16.msra.mxu0 %v1106
    %1410 = vmatpush.bf16.msra.mxu0 %v1102
    %1411 = vmatpush.bf16.msra.mxu0 %v1098
    %1412 = vmatmul.bf16.gmra.mxu0 %v142
    %v1413 = vpop.f32.mrf.mxu0
    %v1414 = vadd.f32 %v1400, %v1413
    %v1415 = vpop.f32.mrf.mxu0
    %v1416 = vadd.f32 %v1402, %v1415
    %1417 = vdwg.mxu0
    %1418 = vmatpush.bf16.msra.mxu0 0
    %1419 = vmatpush.bf16.msra.mxu0 0
    %1420 = vmatpush.bf16.msra.mxu0 0
    %1421 = vmatpush.bf16.msra.mxu0 0
    %1422 = vmatpush.bf16.msra.mxu0 0
    %1423 = vmatpush.bf16.msra.mxu0 0
    %1424 = vmatpush.bf16.msra.mxu0 0
    %1425 = vmatpush.bf16.msra.mxu0 %v1130
    %1426 = vmatmul.bf16.gmra.mxu0 %v1332
    %v1427 = vpop.f32.mrf.mxu0
    %v1428 = vadd.f32 %v1414, %v1427
    %v1429 = vpop.f32.mrf.mxu0
    %v1430 = vadd.f32 %v1416, %v1429
    %1431 = vdwg.mxu0
    %1432 = vmatpush.bf16.msra.mxu0 %v967
    %1433 = vmatpush.bf16.msra.mxu0 %v963
    %1434 = vmatpush.bf16.msra.mxu0 %v959
    %1435 = vmatpush.bf16.msra.mxu0 %v955
    %1436 = vmatpush.bf16.msra.mxu0 %v951
    %1437 = vmatpush.bf16.msra.mxu0 %v947
    %1438 = vmatpush.bf16.msra.mxu0 %v943
    %1439 = vmatpush.bf16.msra.mxu0 %v939
    %1440 = vmatmul.bf16.gmra.mxu0 %v137
    %v1441 = vpop.f32.mrf.mxu0
    %v1442 = vadd.f32 %v343, %v1441
    %v1443 = vpop.f32.mrf.mxu0
    %v1444 = vadd.f32 %v343, %v1443
    %1445 = vdwg.mxu0
    %1446 = vmatpush.bf16.msra.mxu0 %v999
    %1447 = vmatpush.bf16.msra.mxu0 %v995
    %1448 = vmatpush.bf16.msra.mxu0 %v991
    %1449 = vmatpush.bf16.msra.mxu0 %v987
    %1450 = vmatpush.bf16.msra.mxu0 %v983
    %1451 = vmatpush.bf16.msra.mxu0 %v979
    %1452 = vmatpush.bf16.msra.mxu0 %v975
    %1453 = vmatpush.bf16.msra.mxu0 %v971
    %1454 = vmatmul.bf16.gmra.mxu0 %v138
    %v1455 = vpop.f32.mrf.mxu0
    %v1456 = vadd.f32 %v1442, %v1455
    %v1457 = vpop.f32.mrf.mxu0
    %v1458 = vadd.f32 %v1444, %v1457
    %1459 = vdwg.mxu0
    %1460 = vmatpush.bf16.msra.mxu0 %v1031
    %1461 = vmatpush.bf16.msra.mxu0 %v1027
    %1462 = vmatpush.bf16.msra.mxu0 %v1023
    %1463 = vmatpush.bf16.msra.mxu0 %v1019
    %1464 = vmatpush.bf16.msra.mxu0 %v1015
    %1465 = vmatpush.bf16.msra.mxu0 %v1011
    %1466 = vmatpush.bf16.msra.mxu0 %v1007
    %1467 = vmatpush.bf16.msra.mxu0 %v1003
    %1468 = vmatmul.bf16.gmra.mxu0 %v139
    %v1469 = vpop.f32.mrf.mxu0
    %v1470 = vadd.f32 %v1456, %v1469
    %v1471 = vpop.f32.mrf.mxu0
    %v1472 = vadd.f32 %v1458, %v1471
    %1473 = vdwg.mxu0
    %1474 = vmatpush.bf16.msra.mxu0 %v1063
    %1475 = vmatpush.bf16.msra.mxu0 %v1059
    %1476 = vmatpush.bf16.msra.mxu0 %v1055
    %1477 = vmatpush.bf16.msra.mxu0 %v1051
    %1478 = vmatpush.bf16.msra.mxu0 %v1047
    %1479 = vmatpush.bf16.msra.mxu0 %v1043
    %1480 = vmatpush.bf16.msra.mxu0 %v1039
    %1481 = vmatpush.bf16.msra.mxu0 %v1035
    %1482 = vmatmul.bf16.gmra.mxu0 %v140
    %v1483 = vpop.f32.mrf.mxu0
    %v1484 = vadd.f32 %v1470, %v1483
    %v1485 = vpop.f32.mrf.mxu0
    %v1486 = vadd.f32 %v1472, %v1485
    %1487 = vdwg.mxu0
    %1488 = vmatpush.bf16.msra.mxu0 %v1095
    %1489 = vmatpush.bf16.msra.mxu0 %v1091
    %1490 = vmatpush.bf16.msra.mxu0 %v1087
    %1491 = vmatpush.bf16.msra.mxu0 %v1083
    %1492 = vmatpush.bf16.msra.mxu0 %v1079
    %1493 = vmatpush.bf16.msra.mxu0 %v1075
    %1494 = vmatpush.bf16.msra.mxu0 %v1071
    %1495 = vmatpush.bf16.msra.mxu0 %v1067
    %1496 = vmatmul.bf16.gmra.mxu0 %v141
    %v1497 = vpop.f32.mrf.mxu0
    %v1498 = vadd.f32 %v1484, %v1497
    %v1499 = vpop.f32.mrf.mxu0
    %v1500 = vadd.f32 %v1486, %v1499
    %1501 = vdwg.mxu0
    %1502 = vmatpush.bf16.msra.mxu0 %v1127
    %1503 = vmatpush.bf16.msra.mxu0 %v1123
    %1504 = vmatpush.bf16.msra.mxu0 %v1119
    %1505 = vmatpush.bf16.msra.mxu0 %v1115
    %1506 = vmatpush.bf16.msra.mxu0 %v1111
    %1507 = vmatpush.bf16.msra.mxu0 %v1107
    %1508 = vmatpush.bf16.msra.mxu0 %v1103
    %1509 = vmatpush.bf16.msra.mxu0 %v1099
    %1510 = vmatmul.bf16.gmra.mxu0 %v142
    %v1511 = vpop.f32.mrf.mxu0
    %v1512 = vadd.f32 %v1498, %v1511
    %v1513 = vpop.f32.mrf.mxu0
    %v1514 = vadd.f32 %v1500, %v1513
    %1515 = vdwg.mxu0
    %1516 = vmatpush.bf16.msra.mxu0 0
    %1517 = vmatpush.bf16.msra.mxu0 0
    %1518 = vmatpush.bf16.msra.mxu0 0
    %1519 = vmatpush.bf16.msra.mxu0 0
    %1520 = vmatpush.bf16.msra.mxu0 0
    %1521 = vmatpush.bf16.msra.mxu0 0
    %1522 = vmatpush.bf16.msra.mxu0 0
    %1523 = vmatpush.bf16.msra.mxu0 %v1131
    %1524 = vmatmul.bf16.gmra.mxu0 %v1332
    %v1525 = vpop.f32.mrf.mxu0
    %v1526 = vadd.f32 %v1512, %v1525
    %v1527 = vpop.f32.mrf.mxu0
    %v1528 = vadd.f32 %v1514, %v1527
    %1529 = vdwg.mxu0
    %1530 = vmatpush.bf16.msra.mxu0 %v968
    %1531 = vmatpush.bf16.msra.mxu0 %v964
    %1532 = vmatpush.bf16.msra.mxu0 %v960
    %1533 = vmatpush.bf16.msra.mxu0 %v956
    %1534 = vmatpush.bf16.msra.mxu0 %v952
    %1535 = vmatpush.bf16.msra.mxu0 %v948
    %1536 = vmatpush.bf16.msra.mxu0 %v944
    %1537 = vmatpush.bf16.msra.mxu0 %v940
    %1538 = vmatmul.bf16.gmra.mxu0 %v137
    %v1539 = vpop.f32.mrf.mxu0
    %v1540 = vadd.f32 %v344, %v1539
    %v1541 = vpop.f32.mrf.mxu0
    %v1542 = vadd.f32 %v344, %v1541
    %1543 = vdwg.mxu0
    %1544 = vmatpush.bf16.msra.mxu0 %v1000
    %1545 = vmatpush.bf16.msra.mxu0 %v996
    %1546 = vmatpush.bf16.msra.mxu0 %v992
    %1547 = vmatpush.bf16.msra.mxu0 %v988
    %1548 = vmatpush.bf16.msra.mxu0 %v984
    %1549 = vmatpush.bf16.msra.mxu0 %v980
    %1550 = vmatpush.bf16.msra.mxu0 %v976
    %1551 = vmatpush.bf16.msra.mxu0 %v972
    %1552 = vmatmul.bf16.gmra.mxu0 %v138
    %v1553 = vpop.f32.mrf.mxu0
    %v1554 = vadd.f32 %v1540, %v1553
    %v1555 = vpop.f32.mrf.mxu0
    %v1556 = vadd.f32 %v1542, %v1555
    %1557 = vdwg.mxu0
    %1558 = vmatpush.bf16.msra.mxu0 %v1032
    %1559 = vmatpush.bf16.msra.mxu0 %v1028
    %1560 = vmatpush.bf16.msra.mxu0 %v1024
    %1561 = vmatpush.bf16.msra.mxu0 %v1020
    %1562 = vmatpush.bf16.msra.mxu0 %v1016
    %1563 = vmatpush.bf16.msra.mxu0 %v1012
    %1564 = vmatpush.bf16.msra.mxu0 %v1008
    %1565 = vmatpush.bf16.msra.mxu0 %v1004
    %1566 = vmatmul.bf16.gmra.mxu0 %v139
    %v1567 = vpop.f32.mrf.mxu0
    %v1568 = vadd.f32 %v1554, %v1567
    %v1569 = vpop.f32.mrf.mxu0
    %v1570 = vadd.f32 %v1556, %v1569
    %1571 = vdwg.mxu0
    %1572 = vmatpush.bf16.msra.mxu0 %v1064
    %1573 = vmatpush.bf16.msra.mxu0 %v1060
    %1574 = vmatpush.bf16.msra.mxu0 %v1056
    %1575 = vmatpush.bf16.msra.mxu0 %v1052
    %1576 = vmatpush.bf16.msra.mxu0 %v1048
    %1577 = vmatpush.bf16.msra.mxu0 %v1044
    %1578 = vmatpush.bf16.msra.mxu0 %v1040
    %1579 = vmatpush.bf16.msra.mxu0 %v1036
    %1580 = vmatmul.bf16.gmra.mxu0 %v140
    %v1581 = vpop.f32.mrf.mxu0
    %v1582 = vadd.f32 %v1568, %v1581
    %v1583 = vpop.f32.mrf.mxu0
    %v1584 = vadd.f32 %v1570, %v1583
    %1585 = vdwg.mxu0
    %1586 = vmatpush.bf16.msra.mxu0 %v1096
    %1587 = vmatpush.bf16.msra.mxu0 %v1092
    %1588 = vmatpush.bf16.msra.mxu0 %v1088
    %1589 = vmatpush.bf16.msra.mxu0 %v1084
    %1590 = vmatpush.bf16.msra.mxu0 %v1080
    %1591 = vmatpush.bf16.msra.mxu0 %v1076
    %1592 = vmatpush.bf16.msra.mxu0 %v1072
    %1593 = vmatpush.bf16.msra.mxu0 %v1068
    %1594 = vmatmul.bf16.gmra.mxu0 %v141
    %v1595 = vpop.f32.mrf.mxu0
    %v1596 = vadd.f32 %v1582, %v1595
    %v1597 = vpop.f32.mrf.mxu0
    %v1598 = vadd.f32 %v1584, %v1597
    %1599 = vdwg.mxu0
    %1600 = vmatpush.bf16.msra.mxu0 %v1128
    %1601 = vmatpush.bf16.msra.mxu0 %v1124
    %1602 = vmatpush.bf16.msra.mxu0 %v1120
    %1603 = vmatpush.bf16.msra.mxu0 %v1116
    %1604 = vmatpush.bf16.msra.mxu0 %v1112
    %1605 = vmatpush.bf16.msra.mxu0 %v1108
    %1606 = vmatpush.bf16.msra.mxu0 %v1104
    %1607 = vmatpush.bf16.msra.mxu0 %v1100
    %1608 = vmatmul.bf16.gmra.mxu0 %v142
    %v1609 = vpop.f32.mrf.mxu0
    %v1610 = vadd.f32 %v1596, %v1609
    %v1611 = vpop.f32.mrf.mxu0
    %v1612 = vadd.f32 %v1598, %v1611
    %1613 = vdwg.mxu0
    %1614 = vmatpush.bf16.msra.mxu0 0
    %1615 = vmatpush.bf16.msra.mxu0 0
    %1616 = vmatpush.bf16.msra.mxu0 0
    %1617 = vmatpush.bf16.msra.mxu0 0
    %1618 = vmatpush.bf16.msra.mxu0 0
    %1619 = vmatpush.bf16.msra.mxu0 0
    %1620 = vmatpush.bf16.msra.mxu0 0
    %1621 = vmatpush.bf16.msra.mxu0 %v1132
    %1622 = vmatmul.bf16.gmra.mxu0 %v1332
    %v1623 = vpop.f32.mrf.mxu0
    %v1624 = vadd.f32 %v1610, %v1623
    %v1625 = vpop.f32.mrf.mxu0
    %v1626 = vadd.f32 %v1612, %v1625
    %1627 = vdwg.mxu0
    %1628 = vmatpush.bf16.msra.mxu0 %v969
    %1629 = vmatpush.bf16.msra.mxu0 %v965
    %1630 = vmatpush.bf16.msra.mxu0 %v961
    %1631 = vmatpush.bf16.msra.mxu0 %v957
    %1632 = vmatpush.bf16.msra.mxu0 %v953
    %1633 = vmatpush.bf16.msra.mxu0 %v949
    %1634 = vmatpush.bf16.msra.mxu0 %v945
    %1635 = vmatpush.bf16.msra.mxu0 %v941
    %1636 = vmatmul.bf16.gmra.mxu0 %v137
    %v1637 = vpop.f32.mrf.mxu0
    %v1638 = vadd.f32 %v345, %v1637
    %v1639 = vpop.f32.mrf.mxu0
    %v1640 = vadd.f32 %v345, %v1639
    %1641 = vdwg.mxu0
    %1642 = vmatpush.bf16.msra.mxu0 %v1001
    %1643 = vmatpush.bf16.msra.mxu0 %v997
    %1644 = vmatpush.bf16.msra.mxu0 %v993
    %1645 = vmatpush.bf16.msra.mxu0 %v989
    %1646 = vmatpush.bf16.msra.mxu0 %v985
    %1647 = vmatpush.bf16.msra.mxu0 %v981
    %1648 = vmatpush.bf16.msra.mxu0 %v977
    %1649 = vmatpush.bf16.msra.mxu0 %v973
    %1650 = vmatmul.bf16.gmra.mxu0 %v138
    %v1651 = vpop.f32.mrf.mxu0
    %v1652 = vadd.f32 %v1638, %v1651
    %v1653 = vpop.f32.mrf.mxu0
    %v1654 = vadd.f32 %v1640, %v1653
    %1655 = vdwg.mxu0
    %1656 = vmatpush.bf16.msra.mxu0 %v1033
    %1657 = vmatpush.bf16.msra.mxu0 %v1029
    %1658 = vmatpush.bf16.msra.mxu0 %v1025
    %1659 = vmatpush.bf16.msra.mxu0 %v1021
    %1660 = vmatpush.bf16.msra.mxu0 %v1017
    %1661 = vmatpush.bf16.msra.mxu0 %v1013
    %1662 = vmatpush.bf16.msra.mxu0 %v1009
    %1663 = vmatpush.bf16.msra.mxu0 %v1005
    %1664 = vmatmul.bf16.gmra.mxu0 %v139
    %v1665 = vpop.f32.mrf.mxu0
    %v1666 = vadd.f32 %v1652, %v1665
    %v1667 = vpop.f32.mrf.mxu0
    %v1668 = vadd.f32 %v1654, %v1667
    %1669 = vdwg.mxu0
    %1670 = vmatpush.bf16.msra.mxu0 %v1065
    %1671 = vmatpush.bf16.msra.mxu0 %v1061
    %1672 = vmatpush.bf16.msra.mxu0 %v1057
    %1673 = vmatpush.bf16.msra.mxu0 %v1053
    %1674 = vmatpush.bf16.msra.mxu0 %v1049
    %1675 = vmatpush.bf16.msra.mxu0 %v1045
    %1676 = vmatpush.bf16.msra.mxu0 %v1041
    %1677 = vmatpush.bf16.msra.mxu0 %v1037
    %1678 = vmatmul.bf16.gmra.mxu0 %v140
    %v1679 = vpop.f32.mrf.mxu0
    %v1680 = vadd.f32 %v1666, %v1679
    %v1681 = vpop.f32.mrf.mxu0
    %v1682 = vadd.f32 %v1668, %v1681
    %1683 = vdwg.mxu0
    %1684 = vmatpush.bf16.msra.mxu0 %v1097
    %1685 = vmatpush.bf16.msra.mxu0 %v1093
    %1686 = vmatpush.bf16.msra.mxu0 %v1089
    %1687 = vmatpush.bf16.msra.mxu0 %v1085
    %1688 = vmatpush.bf16.msra.mxu0 %v1081
    %1689 = vmatpush.bf16.msra.mxu0 %v1077
    %1690 = vmatpush.bf16.msra.mxu0 %v1073
    %1691 = vmatpush.bf16.msra.mxu0 %v1069
    %1692 = vmatmul.bf16.gmra.mxu0 %v141
    %v1693 = vpop.f32.mrf.mxu0
    %v1694 = vadd.f32 %v1680, %v1693
    %v1695 = vpop.f32.mrf.mxu0
    %v1696 = vadd.f32 %v1682, %v1695
    %1697 = vdwg.mxu0
    %1698 = vmatpush.bf16.msra.mxu0 %v1129
    %1699 = vmatpush.bf16.msra.mxu0 %v1125
    %1700 = vmatpush.bf16.msra.mxu0 %v1121
    %1701 = vmatpush.bf16.msra.mxu0 %v1117
    %1702 = vmatpush.bf16.msra.mxu0 %v1113
    %1703 = vmatpush.bf16.msra.mxu0 %v1109
    %1704 = vmatpush.bf16.msra.mxu0 %v1105
    %1705 = vmatpush.bf16.msra.mxu0 %v1101
    %1706 = vmatmul.bf16.gmra.mxu0 %v142
    %v1707 = vpop.f32.mrf.mxu0
    %v1708 = vadd.f32 %v1694, %v1707
    %v1709 = vpop.f32.mrf.mxu0
    %v1710 = vadd.f32 %v1696, %v1709
    %1711 = vdwg.mxu0
    %1712 = vmatpush.bf16.msra.mxu0 0
    %1713 = vmatpush.bf16.msra.mxu0 0
    %1714 = vmatpush.bf16.msra.mxu0 0
    %1715 = vmatpush.bf16.msra.mxu0 0
    %1716 = vmatpush.bf16.msra.mxu0 0
    %1717 = vmatpush.bf16.msra.mxu0 0
    %1718 = vmatpush.bf16.msra.mxu0 0
    %1719 = vmatpush.bf16.msra.mxu0 %v1133
    %1720 = vmatmul.bf16.gmra.mxu0 %v1332
    %v1721 = vpop.f32.mrf.mxu0
    %v1722 = vadd.f32 %v1708, %v1721
    %v1723 = vpop.f32.mrf.mxu0
    %v1724 = vadd.f32 %v1710, %v1723
    %1725 = vdwg.mxu0
    %v1726 = vpack.c.bf16 %v1430, %v1428
    %v1727 = vpack.c.bf16 %v1528, %v1526
    %v1728 = vpack.c.bf16 %v1626, %v1624
    %v1729 = vpack.c.bf16 %v1724, %v1722
    %v1730 = vunpack.c.l.bf16 %v1726
    %v1731 = vunpack.c.l.bf16 %v1727
    %v1732 = vunpack.c.l.bf16 %v1728
    %v1733 = vunpack.c.l.bf16 %v1729
    %v1734 = vunpack.c.h.bf16 %v1726
    %v1735 = vunpack.c.h.bf16 %v1727
    %v1736 = vunpack.c.h.bf16 %v1728
    %v1737 = vunpack.c.h.bf16 %v1729
    %v1738 = vtanh.pop %v1730
    %v1739 = vtanh.pop %v1731
    %v1740 = vtanh.pop %v1732
    %v1741 = vtanh.pop %v1733
    %v1742 = vtanh.pop %v1734
    %v1743 = vtanh.pop %v1735
    %v1744 = vtanh.pop %v1736
    %v1745 = vtanh.pop %v1737
    %v1746 = vpack.c.bf16 %v1742, %v1738
    %v1747 = vpack.c.bf16 %v1743, %v1739
    %v1748 = vpack.c.bf16 %v1744, %v1740
    %v1749 = vpack.c.bf16 %v1745, %v1741
    %v1750 = vld [vmem:[#allocation5] sm:$0xf]
    %v1751 = vld [vmem:[#allocation5 + $0x4] sm:$0xf]
    %v1752 = vld [vmem:[#allocation5 + $0x8] sm:$0xf]
    %v1753 = vld [vmem:[#allocation5 + $0xc] sm:$0xf]
    %v1754 = vld [vmem:[#allocation5 + $0x10] sm:$0xf]
    %v1755 = vld [vmem:[#allocation5 + $0x14] sm:$0xf]
    %v1756 = vld [vmem:[#allocation5 + $0x18] sm:$0xf]
    %v1757 = vld [vmem:[#allocation5 + $0x1c] sm:$0xf]
    %v1758 = vld [vmem:[#allocation5 + $0x20] sm:$0xf]
    %v1759 = vld [vmem:[#allocation5 + $0x24] sm:$0xf]
    %v1760 = vld [vmem:[#allocation5 + $0x28] sm:$0xf]
    %v1761 = vld [vmem:[#allocation5 + $0x2c] sm:$0xf]
    %v1762 = vld [vmem:[#allocation5 + $0x30] sm:$0xf]
    %v1763 = vld [vmem:[#allocation5 + $0x34] sm:$0xf]
    %v1764 = vld [vmem:[#allocation5 + $0x38] sm:$0xf]
    %v1765 = vld [vmem:[#allocation5 + $0x3c] sm:$0xf]
    %v1766 = vld [vmem:[#allocation5 + $0x40] sm:$0xf]
    %v1767 = vld [vmem:[#allocation5 + $0x44] sm:$0xf]
    %v1768 = vld [vmem:[#allocation5 + $0x48] sm:$0xf]
    %v1769 = vld [vmem:[#allocation5 + $0x4c] sm:$0xf]
    %v1770 = vld [vmem:[#allocation5 + $0x50] sm:$0xf]
    %v1771 = vld [vmem:[#allocation5 + $0x54] sm:$0xf]
    %v1772 = vld [vmem:[#allocation5 + $0x58] sm:$0xf]
    %v1773 = vld [vmem:[#allocation5 + $0x5c] sm:$0xf]
    %v1774 = vld [vmem:[#allocation5 + $0x60] sm:$0xf]
    %v1775 = vld [vmem:[#allocation5 + $0x64] sm:$0xf]
    %v1776 = vld [vmem:[#allocation5 + $0x68] sm:$0xf]
    %v1777 = vld [vmem:[#allocation5 + $0x6c] sm:$0xf]
    %v1778 = vld [vmem:[#allocation5 + $0x70] sm:$0xf]
    %v1779 = vld [vmem:[#allocation5 + $0x74] sm:$0xf]
    %v1780 = vld [vmem:[#allocation5 + $0x78] sm:$0xf]
    %v1781 = vld [vmem:[#allocation5 + $0x7c] sm:$0xf]
    %v1782 = vld [vmem:[#allocation5 + $0x80] sm:$0xf]
    %v1783 = vld [vmem:[#allocation5 + $0x84] sm:$0xf]
    %v1784 = vld [vmem:[#allocation5 + $0x88] sm:$0xf]
    %v1785 = vld [vmem:[#allocation5 + $0x8c] sm:$0xf]
    %v1786 = vld [vmem:[#allocation5 + $0x90] sm:$0xf]
    %v1787 = vld [vmem:[#allocation5 + $0x94] sm:$0xf]
    %v1788 = vld [vmem:[#allocation5 + $0x98] sm:$0xf]
    %v1789 = vld [vmem:[#allocation5 + $0x9c] sm:$0xf]
    %v1790 = vld [vmem:[#allocation5 + $0xa0] sm:$0xf]
    %v1791 = vld [vmem:[#allocation5 + $0xa4] sm:$0xf]
    %v1792 = vld [vmem:[#allocation5 + $0xa8] sm:$0xf]
    %v1793 = vld [vmem:[#allocation5 + $0xac] sm:$0xf]
    %v1794 = vld [vmem:[#allocation5 + $0xb0] sm:$0xf]
    %v1795 = vld [vmem:[#allocation5 + $0xb4] sm:$0xf]
    %v1796 = vld [vmem:[#allocation5 + $0xb8] sm:$0xf]
    %v1797 = vld [vmem:[#allocation5 + $0xbc] sm:$0xf]
    %v1798 = vld [vmem:[#allocation5 + $0xc0] sm:$0xf]
    %v1799 = vld [vmem:[#allocation5 + $0xc4] sm:$0xf]
    %v1800 = vld [vmem:[#allocation5 + $0xc8] sm:$0xf]
    %v1801 = vld [vmem:[#allocation5 + $0xcc] sm:$0xf]
    %v1802 = vld [vmem:[#allocation5 + $0xd0] sm:$0xf]
    %v1803 = vld [vmem:[#allocation5 + $0xd4] sm:$0xf]
    %v1804 = vld [vmem:[#allocation5 + $0xd8] sm:$0xf]
    %v1805 = vld [vmem:[#allocation5 + $0xdc] sm:$0xf]
    %v1806 = vld [vmem:[#allocation5 + $0xe0] sm:$0xf]
    %v1807 = vld [vmem:[#allocation5 + $0xe4] sm:$0xf]
    %v1808 = vld [vmem:[#allocation5 + $0xe8] sm:$0xf]
    %v1809 = vld [vmem:[#allocation5 + $0xec] sm:$0xf]
    %v1810 = vld [vmem:[#allocation5 + $0xf0] sm:$0xf]
    %v1811 = vld [vmem:[#allocation5 + $0xf4] sm:$0xf]
    %v1812 = vld [vmem:[#allocation5 + $0xf8] sm:$0xf]
    %v1813 = vld [vmem:[#allocation5 + $0xfc] sm:$0xf]
    %v1814 = vld [vmem:[%s4] sm:$0x1]
    %v1816 = vperm.slane %v1814, 0
    %v1882 = vunpack.c.l.b16 %v1750
    %v1883 = vunpack.c.l.b16 %v1751
    %v1884 = vunpack.c.l.b16 %v1752
    %v1885 = vunpack.c.l.b16 %v1753
    %v1886 = vunpack.c.l.b16 %v1754
    %v1887 = vunpack.c.l.b16 %v1755
    %v1888 = vunpack.c.l.b16 %v1756
    %v1889 = vunpack.c.l.b16 %v1757
    %v1890 = vunpack.c.l.b16 %v1758
    %v1891 = vunpack.c.l.b16 %v1759
    %v1892 = vunpack.c.l.b16 %v1760
    %v1893 = vunpack.c.l.b16 %v1761
    %v1894 = vunpack.c.l.b16 %v1762
    %v1895 = vunpack.c.l.b16 %v1763
    %v1896 = vunpack.c.l.b16 %v1764
    %v1897 = vunpack.c.l.b16 %v1765
    %v1898 = vunpack.c.l.b16 %v1766
    %v1899 = vunpack.c.l.b16 %v1767
    %v1900 = vunpack.c.l.b16 %v1768
    %v1901 = vunpack.c.l.b16 %v1769
    %v1902 = vunpack.c.l.b16 %v1770
    %v1903 = vunpack.c.l.b16 %v1771
    %v1904 = vunpack.c.l.b16 %v1772
    %v1905 = vunpack.c.l.b16 %v1773
    %v1906 = vunpack.c.l.b16 %v1774
    %v1907 = vunpack.c.l.b16 %v1775
    %v1908 = vunpack.c.l.b16 %v1776
    %v1909 = vunpack.c.l.b16 %v1777
    %v1910 = vunpack.c.l.b16 %v1778
    %v1911 = vunpack.c.l.b16 %v1779
    %v1912 = vunpack.c.l.b16 %v1780
    %v1913 = vunpack.c.l.b16 %v1781
    %v1914 = vunpack.c.l.b16 %v1782
    %v1915 = vunpack.c.l.b16 %v1783
    %v1916 = vunpack.c.l.b16 %v1784
    %v1917 = vunpack.c.l.b16 %v1785
    %v1918 = vunpack.c.l.b16 %v1786
    %v1919 = vunpack.c.l.b16 %v1787
    %v1920 = vunpack.c.l.b16 %v1788
    %v1921 = vunpack.c.l.b16 %v1789
    %v1922 = vunpack.c.l.b16 %v1790
    %v1923 = vunpack.c.l.b16 %v1791
    %v1924 = vunpack.c.l.b16 %v1792
    %v1925 = vunpack.c.l.b16 %v1793
    %v1926 = vunpack.c.l.b16 %v1794
    %v1927 = vunpack.c.l.b16 %v1795
    %v1928 = vunpack.c.l.b16 %v1796
    %v1929 = vunpack.c.l.b16 %v1797
    %v1930 = vunpack.c.l.b16 %v1798
    %v1931 = vunpack.c.l.b16 %v1799
    %v1932 = vunpack.c.l.b16 %v1800
    %v1933 = vunpack.c.l.b16 %v1801
    %v1934 = vunpack.c.l.b16 %v1802
    %v1935 = vunpack.c.l.b16 %v1803
    %v1936 = vunpack.c.l.b16 %v1804
    %v1937 = vunpack.c.l.b16 %v1805
    %v1938 = vunpack.c.l.b16 %v1806
    %v1939 = vunpack.c.l.b16 %v1807
    %v1940 = vunpack.c.l.b16 %v1808
    %v1941 = vunpack.c.l.b16 %v1809
    %v1942 = vunpack.c.l.b16 %v1810
    %v1943 = vunpack.c.l.b16 %v1811
    %v1944 = vunpack.c.l.b16 %v1812
    %v1945 = vunpack.c.l.b16 %v1813
    %v1946 = vpack.c.b16 %v1883, %v1882
    %v1947 = vpack.c.b16 %v1885, %v1884
    %v1948 = vpack.c.b16 %v1887, %v1886
    %v1949 = vpack.c.b16 %v1889, %v1888
    %v1950 = vpack.c.b16 %v1891, %v1890
    %v1951 = vpack.c.b16 %v1893, %v1892
    %v1952 = vpack.c.b16 %v1895, %v1894
    %v1953 = vpack.c.b16 %v1897, %v1896
    %v1954 = vpack.c.b16 %v1899, %v1898
    %v1955 = vpack.c.b16 %v1901, %v1900
    %v1956 = vpack.c.b16 %v1903, %v1902
    %v1957 = vpack.c.b16 %v1905, %v1904
    %v1958 = vpack.c.b16 %v1907, %v1906
    %v1959 = vpack.c.b16 %v1909, %v1908
    %v1960 = vpack.c.b16 %v1911, %v1910
    %v1961 = vpack.c.b16 %v1913, %v1912
    %v1962 = vpack.c.b16 %v1915, %v1914
    %v1963 = vpack.c.b16 %v1917, %v1916
    %v1964 = vpack.c.b16 %v1919, %v1918
    %v1965 = vpack.c.b16 %v1921, %v1920
    %v1966 = vpack.c.b16 %v1923, %v1922
    %v1967 = vpack.c.b16 %v1925, %v1924
    %v1968 = vpack.c.b16 %v1927, %v1926
    %v1969 = vpack.c.b16 %v1929, %v1928
    %v1970 = vpack.c.b16 %v1931, %v1930
    %v1971 = vpack.c.b16 %v1933, %v1932
    %v1972 = vpack.c.b16 %v1935, %v1934
    %v1973 = vpack.c.b16 %v1937, %v1936
    %v1974 = vpack.c.b16 %v1939, %v1938
    %v1975 = vpack.c.b16 %v1941, %v1940
    %v1976 = vpack.c.b16 %v1943, %v1942
    %v1977 = vpack.c.b16 %v1945, %v1944
    %2010 = vmatpush.bf16.msra.mxu0 %v1953
    %2011 = vmatpush.bf16.msra.mxu0 %v1952
    %2012 = vmatpush.bf16.msra.mxu0 %v1951
    %2013 = vmatpush.bf16.msra.mxu0 %v1950
    %2014 = vmatpush.bf16.msra.mxu0 %v1949
    %2015 = vmatpush.bf16.msra.mxu0 %v1948
    %2016 = vmatpush.bf16.msra.mxu0 %v1947
    %2017 = vmatpush.bf16.msra.mxu0 %v1946
    %2018 = vmatmul.bf16.gmra.mxu0 %v1746
    %v2019 = vpop.f32.mrf.mxu0
    %v2020 = vadd.f32 %v1816, %v2019
    %v2021 = vpop.f32.mrf.mxu0
    %v2022 = vadd.f32 %v1816, %v2021
    %2023 = vdwg.mxu0
    %2024 = vmatpush.bf16.msra.mxu0 %v1961
    %2025 = vmatpush.bf16.msra.mxu0 %v1960
    %2026 = vmatpush.bf16.msra.mxu0 %v1959
    %2027 = vmatpush.bf16.msra.mxu0 %v1958
    %2028 = vmatpush.bf16.msra.mxu0 %v1957
    %2029 = vmatpush.bf16.msra.mxu0 %v1956
    %2030 = vmatpush.bf16.msra.mxu0 %v1955
    %2031 = vmatpush.bf16.msra.mxu0 %v1954
    %2032 = vmatmul.bf16.gmra.mxu0 %v1747
    %v2033 = vpop.f32.mrf.mxu0
    %v2034 = vadd.f32 %v2020, %v2033
    %v2035 = vpop.f32.mrf.mxu0
    %v2036 = vadd.f32 %v2022, %v2035
    %2037 = vdwg.mxu0
    %2038 = vmatpush.bf16.msra.mxu0 %v1969
    %2039 = vmatpush.bf16.msra.mxu0 %v1968
    %2040 = vmatpush.bf16.msra.mxu0 %v1967
    %2041 = vmatpush.bf16.msra.mxu0 %v1966
    %2042 = vmatpush.bf16.msra.mxu0 %v1965
    %2043 = vmatpush.bf16.msra.mxu0 %v1964
    %2044 = vmatpush.bf16.msra.mxu0 %v1963
    %2045 = vmatpush.bf16.msra.mxu0 %v1962
    %2046 = vmatmul.bf16.gmra.mxu0 %v1748
    %v2047 = vpop.f32.mrf.mxu0
    %v2048 = vadd.f32 %v2034, %v2047
    %v2049 = vpop.f32.mrf.mxu0
    %v2050 = vadd.f32 %v2036, %v2049
    %2051 = vdwg.mxu0
    %2052 = vmatpush.bf16.msra.mxu0 %v1977
    %2053 = vmatpush.bf16.msra.mxu0 %v1976
    %2054 = vmatpush.bf16.msra.mxu0 %v1975
    %2055 = vmatpush.bf16.msra.mxu0 %v1974
    %2056 = vmatpush.bf16.msra.mxu0 %v1973
    %2057 = vmatpush.bf16.msra.mxu0 %v1972
    %2058 = vmatpush.bf16.msra.mxu0 %v1971
    %2059 = vmatpush.bf16.msra.mxu0 %v1970
    %2060 = vmatmul.bf16.gmra.mxu0 %v1749
    %v2061 = vpop.f32.mrf.mxu0
    %v2062 = vadd.f32 %v2048, %v2061
    %v2063 = vpop.f32.mrf.mxu0
    %v2064 = vadd.f32 %v2050, %v2063
    %2065 = vdwg.mxu0
    %2066 = vmax.xlane.f32.xlu0 %v2062
    %v2067 = vpop.xlane.xlu0 %2066
    %2068 = vmax.xlane.f32.xlu0 %v2064
    %v2069 = vpop.xlane.xlu0 %2068
    %v2070 = vsub.f32 %v2062, %v2067
    %v2071 = vsub.f32 %v2064, %v2069
    %v2072 = vmul.f32 %v2070, 1.442695
    %v2073 = vpow.pop %v2072
    %v2074 = vmul.f32 %v2071, 1.442695
    %v2075 = vpow.pop %v2074
    %2076 = vadd.xlane.f32.xlu0 %v2073
    %v2077 = vpop.xlane.xlu0 %2076
    %2078 = vadd.xlane.f32.xlu0 %v2075
    %v2079 = vpop.xlane.xlu0 %2078
    %v2080 = vlog2.pop %v2077
    %v2081 = vmul.f32 %v2080, 0.6931472
    %v2082 = vlog2.pop %v2079
    %v2083 = vmul.f32 %v2082, 0.6931472
    %v2084 = vsub.f32 %v2070, %v2081
    %v2085 = vsub.f32 %v2071, %v2083
    %2086 = vst [vmem:[#allocation7] sm:$0xff] %v2084
    %2087 = vst [vmem:[#allocation7 + $0x8] sm:$0xff] %v2085
    // Predicated region
    $region30: #{netfull_forward.1} parent=1 // pred_check
      _
    $region31: #{netfull_forward.1} parent=1 // pred_check_branch
      %2089 = sbr.rel (0) target = $region33
    $region32: #{netfull_forward.1} parent=1 // pred_region
      %2091 = vsyncadd [#allocation4], 224
      %s2092 = sshll.u32 [#allocation7], 4
      %s2093 = int_to_ptr.vmem [resolvable:$true] %s2092
      %s2094 = sshll.u32 %s5, 4
      %s2095 = int_to_ptr.hbm [resolvable:$true] %s2094
      %2100 = dma.vmem_to_hbm [thread:$0]  %s2093, 32, %s2095, [#allocation4], 32, 32, 2
    $region33: #{netfull_forward.1} parent=1 // pred_fallthru
      _
    // Predicated region
    $region34: #{netfull_forward.1} parent=1 // pred_check
      _
    $region35: #{netfull_forward.1} parent=1 // pred_check_branch
      %2102 = sbr.rel (0) target = $region37
    $region36: #{netfull_forward.1} parent=1 // pred_region
      %2104 = dma.done [#allocation4], 256
    $region37: #{netfull_forward.1} parent=1 // pred_fallthru
      _
    %2105 = vsyncpa [#allocation3], 1
    %2106 = vsyncpa [#allocation6], 1
    %2107 = vsyncpa [#allocation4], 1

</llo_original>
